<compile_context>
chip_gen: v5e
topology: v5e:2x2
jax: 0.10.0
libtpu: 0.0.40
codegen_flags: <defaults>
</compile_context>

<pallas_src>
import jax
import jax.numpy as jnp
from jax.experimental import pallas as pl
from jax.experimental.pallas import tpu as pltpu

# (in_dim, out_dim) for each Linear layer, in PyTorch order.
LAYER_DIMS = [
    (54, 128),
    (128, 256),
    (256, 512),
    (512, 512),
    (512, 512),
    (512, 256),
    (256, 128),
    (128, 128),
    (128, 18),
]
NUM_LAYERS = len(LAYER_DIMS)

# Hardware-friendly padded dims: in (sublane) -> multiple of 8, out (lane) -> multiple of 128.
IN_PAD = [64, 128, 256, 512, 512, 512, 256, 128, 128]
OUT_PAD = [128, 256, 512, 512, 512, 256, 128, 128, 128]

# One packed bf16 weight slab: layer i lives at rows [W_ROW_OFF[i], +IN_PAD[i]),
# cols [0, OUT_PAD[i]).  All row offsets are multiples of 64 (bf16-tile aligned),
# all column extents multiples of 128 (lane-tile aligned) -> static slices are
# free views inside the kernel.
W_ROW_OFF = []
_off = 0
for _ip in IN_PAD:
    W_ROW_OFF.append(_off)
    _off += _ip
W_ROWS = _off            # 2496
W_COLS = 512             # widest layer

BIAS_COLS = 512          # every bias row padded to this width
NEG_FILL = -1.0e30       # padded logits -> exp() == 0 in the log-softmax


def _round_up(x, m):
    return ((x + m - 1) // m) * m


def _mlp_logsoftmax_kernel(x_ref, w_ref, b_ref, out_ref):
    """One batch tile of the full forward pass.

    Refs (all VMEM):
      x_ref:   [TB, 64]        bf16 input tile (features zero-padded 54->64)
      w_ref:   [2496, 512]     bf16 packed weight slab (grid-invariant)
      b_ref:   [9, 512]        f32 packed biases (row i = bias_i; last row has
                               NEG_FILL in cols 18..127)
      out_ref: [TB, 128]       f32 log-probabilities (cols >= 18 are junk)
    """
    h = x_ref[...]                                            # bf16 [TB, 64]

    # Linear (+ ReLU except last). Dropout(p=0.2) is identity at inference.
    # TODO(synk): training-mode Dropout not implemented; eval semantics only.
    for layer in range(NUM_LAYERS):
        r0 = W_ROW_OFF[layer]
        w = w_ref[r0 : r0 + IN_PAD[layer], : OUT_PAD[layer]]   # bf16 static slice
        b = b_ref[layer : layer + 1, : OUT_PAD[layer]]         # f32 [1, out]
        h = jnp.dot(h, w, preferred_element_type=jnp.float32) + b   # f32 accumulate
        if layer < NUM_LAYERS - 1:
            h = jnp.maximum(h, 0.0).astype(jnp.bfloat16)       # bf16 MXU feed

    # log_softmax over the lane-dense padded feature axis (padded cols are -1e30,
    # so they contribute exactly 0 to the denominator and never win the max).
    m = jnp.max(h, axis=1, keepdims=True)
    shifted = h - m
    lse = jnp.log(jnp.sum(jnp.exp(shifted), axis=1, keepdims=True))
    out_ref[...] = (shifted - lse).astype(out_ref.dtype)


def prepare_params(params_fp32):
    """Pack f32 params (w1,b1,...,w9,b9; wi:[in,out], bi:[out]) into kernel layout."""
    w_slab = jnp.zeros((W_ROWS, W_COLS), jnp.float32)
    for i, (fin, fout) in enumerate(LAYER_DIMS):
        w = params_fp32[2 * i].reshape(fin, fout)
        w_slab = w_slab.at[W_ROW_OFF[i] : W_ROW_OFF[i] + fin, :fout].set(w)
    w_slab = w_slab.astype(jnp.bfloat16)                    # [2496, 512] bf16

    bias_rows = []
    for i, (_, fout) in enumerate(LAYER_DIMS):
        b = params_fp32[2 * i + 1].reshape(fout)
        row = jnp.zeros((BIAS_COLS,), jnp.float32)
        if i == NUM_LAYERS - 1:
            # Padded logit columns get a huge negative bias.
            row = row.at[: OUT_PAD[i]].set(NEG_FILL)
        row = row.at[:fout].set(b)
        bias_rows.append(row)
    bias_pack = jnp.stack(bias_rows, axis=0)                # [9, 512] f32
    return w_slab, bias_pack


@jax.jit
def net_forward(x, w_slab, bias_pack):
    """x: [B, 54] f32/bf16. w_slab/bias_pack from prepare_params. Returns [B, 18] log-probs."""
    batch = x.shape[0]
    b8 = _round_up(batch, 8)

    # Tile / grid selection:
    #  * batch <= 256: one step (weight-DMA / overhead bound; don't split).
    #  * batch  > 256: even number of steps (>= 2) so both v7x TensorCores get
    #    work; tb capped at 512 and rounded to 16 (bf16 sublane packing).
    if b8 <= 256:
        n_steps = 1
        tb = b8
    else:
        n_steps = _round_up(pl.cdiv(b8, 512), 2)
        tb = _round_up(pl.cdiv(b8, n_steps), 16)
    b_pad = tb * n_steps

    # Pad batch -> b_pad, features 54 -> 64, and cast to bf16 (the MXU feed dtype).
    xp = jnp.zeros((b_pad, IN_PAD[0]), jnp.bfloat16)
    xp = xp.at[:batch, : x.shape[1]].set(x.astype(jnp.bfloat16))

    w_elems = sum(i * o for i, o in zip(IN_PAD, OUT_PAD))
    cost = pl.CostEstimate(
        flops=2 * b_pad * w_elems,
        transcendentals=b_pad * OUT_PAD[-1],
        bytes_accessed=(W_ROWS * W_COLS * 2                 # bf16 weight slab
                        + NUM_LAYERS * BIAS_COLS * 4        # packed biases
                        + b_pad * IN_PAD[0] * 2             # bf16 input
                        + b_pad * OUT_PAD[-1] * 4),         # f32 output
    )

    in_specs = [
        pl.BlockSpec((tb, IN_PAD[0]), lambda i: (i, 0)),          # x tile
        pl.BlockSpec((W_ROWS, W_COLS), lambda i: (0, 0)),         # grid-invariant weights
        pl.BlockSpec((NUM_LAYERS, BIAS_COLS), lambda i: (0, 0)),  # grid-invariant biases
    ]

    out_padded = pl.pallas_call(
        _mlp_logsoftmax_kernel,
        out_shape=jax.ShapeDtypeStruct((b_pad, OUT_PAD[-1]), jnp.float32),
        grid=(n_steps,),
        in_specs=in_specs,
        out_specs=pl.BlockSpec((tb, OUT_PAD[-1]), lambda i: (i, 0)),
        compiler_params=pltpu.CompilerParams(
            dimension_semantics=("parallel",),
            vmem_limit_bytes=20 * 1024 * 1024,
        ),
        cost_estimate=cost,
    )(xp, w_slab, bias_pack)

    return out_padded[:batch, : LAYER_DIMS[-1][1]]


def init_params(key):
    """Deterministic f32 params matching nn.Linear shapes ([in,out] layout)."""
    params = []
    for fan_in, fan_out in LAYER_DIMS:
        kw, kb, key = jax.random.split(key, 3)
        bound = 1.0 / jnp.sqrt(jnp.asarray(fan_in, jnp.float32))
        w = jax.random.uniform(kw, (fan_in, fan_out), jnp.float32, -bound, bound)
        b = jax.random.uniform(kb, (fan_out,), jnp.float32, -bound, bound)
        params.extend([w, b])
    return tuple(params)


def reference_forward(x, params_fp32):
    """Pure-JAX f32 reference (eval-mode Net)."""
    h = x
    for layer in range(NUM_LAYERS):
        w = params_fp32[2 * layer]
        b = params_fp32[2 * layer + 1]
        h = h @ w + b
        if layer < NUM_LAYERS - 1:
            h = jnp.maximum(h, 0.0)
    return jax.nn.log_softmax(h, axis=1)


if __name__ == "__main__":
    key = jax.random.PRNGKey(0)
    kx, kp = jax.random.split(key)

    batch = 8
    x = jax.random.normal(kx, (batch, 54), dtype=jnp.float32)
    params_fp32 = init_params(kp)
    w_slab, bias_pack = prepare_params(params_fp32)

    out = net_forward(x, w_slab, bias_pack)
    out = jax.block_until_ready(out)

    ref = reference_forward(x, params_fp32)
    assert out.shape == (batch, 18), out.shape
    # Tolerance loosened vs. a pure-fp32 version because weights/MXU feeds are bf16.
    assert jnp.allclose(out, ref, atol=5e-2, rtol=5e-2), (
        "mismatch vs reference, max abs diff = %f" % float(jnp.max(jnp.abs(out - ref))))
    # log_softmax sanity: rows sum to 1 in prob space.
    assert jnp.allclose(jnp.sum(jnp.exp(out), axis=1), 1.0, atol=1e-3)

    print("KERNEL_OK")
</pallas_src>

<mosaic_0001>
module attributes {stable_mosaic.version = 11 : i64} {
  func.func @_mlp_logsoftmax_kernel(%arg0: i32, %arg1: memref<8x64xbf16, #tpu.memory_space<vmem>>, %arg2: memref<2496x512xbf16, #tpu.memory_space<vmem>>, %arg3: memref<9x512xf32, #tpu.memory_space<vmem>>, %arg4: memref<8x128xf32, #tpu.memory_space<vmem>>) attributes {dimension_semantics = [#tpu.dimension_semantics<parallel>], iteration_bounds = array<i64: 1>, scalar_prefetch = 0 : i64, scratch_operands = 0 : i64, tpu.core_type = #tpu.core_type<tc>, window_params = [{transform_indices = @transform_0, window_bounds = array<i64: 8, 64>}, {pipeline_mode = #tpu.pipeline_mode<synchronous>, transform_indices = @transform_1, window_bounds = array<i64: 2496, 512>}, {pipeline_mode = #tpu.pipeline_mode<synchronous>, transform_indices = @transform_2, window_bounds = array<i64: 9, 512>}, {transform_indices = @transform_3, window_bounds = array<i64: 8, 128>}]} {
    %c0 = arith.constant 0 : index
    %c0_0 = arith.constant 0 : index
    %0 = vector.load %arg1[%c0, %c0_0] : memref<8x64xbf16, #tpu.memory_space<vmem>>, vector<8x64xbf16>
    %c0_1 = arith.constant 0 : index
    %c0_2 = arith.constant 0 : index
    %1 = vector.load %arg2[%c0_1, %c0_2] : memref<2496x512xbf16, #tpu.memory_space<vmem>>, vector<64x128xbf16>
    %c0_3 = arith.constant 0 : index
    %c0_4 = arith.constant 0 : index
    %2 = vector.load %arg3[%c0_3, %c0_4] : memref<9x512xf32, #tpu.memory_space<vmem>>, vector<1x128xf32>
    %cst = arith.constant dense<0.000000e+00> : vector<8x128xf32>
    %3 = tpu.matmul %0, %1, %cst {dimension_numbers = #tpu.dot_dimension_numbers<[1], [0], [0], [1], [0, 0, 1, 1], [], []>} : vector<8x64xbf16>, vector<64x128xbf16>, vector<8x128xf32> -> vector<8x128xf32>
    %4 = vector.broadcast %2 : vector<1x128xf32> to vector<8x128xf32>
    %5 = arith.addf %3, %4 : vector<8x128xf32>
    %cst_5 = arith.constant 0.000000e+00 : f32
    %6 = vector.broadcast %cst_5 : f32 to vector<8x128xf32>
    %7 = arith.maximumf %5, %6 : vector<8x128xf32>
    %8 = arith.truncf %7 : vector<8x128xf32> to vector<8x128xbf16>
    %c64 = arith.constant 64 : index
    %c0_6 = arith.constant 0 : index
    %9 = vector.load %arg2[%c64, %c0_6] : memref<2496x512xbf16, #tpu.memory_space<vmem>>, vector<128x256xbf16>
    %c1 = arith.constant 1 : index
    %c0_7 = arith.constant 0 : index
    %10 = vector.load %arg3[%c1, %c0_7] : memref<9x512xf32, #tpu.memory_space<vmem>>, vector<1x256xf32>
    %cst_8 = arith.constant dense<0.000000e+00> : vector<8x256xf32>
    %11 = tpu.matmul %8, %9, %cst_8 {dimension_numbers = #tpu.dot_dimension_numbers<[1], [0], [0], [1], [0, 0, 1, 1], [], []>} : vector<8x128xbf16>, vector<128x256xbf16>, vector<8x256xf32> -> vector<8x256xf32>
    %12 = vector.broadcast %10 : vector<1x256xf32> to vector<8x256xf32>
    %13 = arith.addf %11, %12 : vector<8x256xf32>
    %cst_9 = arith.constant 0.000000e+00 : f32
    %14 = vector.broadcast %cst_9 : f32 to vector<8x256xf32>
    %15 = arith.maximumf %13, %14 : vector<8x256xf32>
    %16 = arith.truncf %15 : vector<8x256xf32> to vector<8x256xbf16>
    %c192 = arith.constant 192 : index
    %c0_10 = arith.constant 0 : index
    %17 = vector.load %arg2[%c192, %c0_10] : memref<2496x512xbf16, #tpu.memory_space<vmem>>, vector<256x512xbf16>
    %c2 = arith.constant 2 : index
    %c0_11 = arith.constant 0 : index
    %18 = vector.load %arg3[%c2, %c0_11] : memref<9x512xf32, #tpu.memory_space<vmem>>, vector<1x512xf32>
    %cst_12 = arith.constant dense<0.000000e+00> : vector<8x512xf32>
    %19 = tpu.matmul %16, %17, %cst_12 {dimension_numbers = #tpu.dot_dimension_numbers<[1], [0], [0], [1], [0, 0, 1, 1], [], []>} : vector<8x256xbf16>, vector<256x512xbf16>, vector<8x512xf32> -> vector<8x512xf32>
    %20 = vector.broadcast %18 : vector<1x512xf32> to vector<8x512xf32>
    %21 = arith.addf %19, %20 : vector<8x512xf32>
    %cst_13 = arith.constant 0.000000e+00 : f32
    %22 = vector.broadcast %cst_13 : f32 to vector<8x512xf32>
    %23 = arith.maximumf %21, %22 : vector<8x512xf32>
    %24 = arith.truncf %23 : vector<8x512xf32> to vector<8x512xbf16>
    %c448 = arith.constant 448 : index
    %c0_14 = arith.constant 0 : index
    %25 = vector.load %arg2[%c448, %c0_14] : memref<2496x512xbf16, #tpu.memory_space<vmem>>, vector<512x512xbf16>
    %c3 = arith.constant 3 : index
    %c0_15 = arith.constant 0 : index
    %26 = vector.load %arg3[%c3, %c0_15] : memref<9x512xf32, #tpu.memory_space<vmem>>, vector<1x512xf32>
    %cst_16 = arith.constant dense<0.000000e+00> : vector<8x512xf32>
    %27 = tpu.matmul %24, %25, %cst_16 {dimension_numbers = #tpu.dot_dimension_numbers<[1], [0], [0], [1], [0, 0, 1, 1], [], []>} : vector<8x512xbf16>, vector<512x512xbf16>, vector<8x512xf32> -> vector<8x512xf32>
    %28 = vector.broadcast %26 : vector<1x512xf32> to vector<8x512xf32>
    %29 = arith.addf %27, %28 : vector<8x512xf32>
    %cst_17 = arith.constant 0.000000e+00 : f32
    %30 = vector.broadcast %cst_17 : f32 to vector<8x512xf32>
    %31 = arith.maximumf %29, %30 : vector<8x512xf32>
    %32 = arith.truncf %31 : vector<8x512xf32> to vector<8x512xbf16>
    %c960 = arith.constant 960 : index
    %c0_18 = arith.constant 0 : index
    %33 = vector.load %arg2[%c960, %c0_18] : memref<2496x512xbf16, #tpu.memory_space<vmem>>, vector<512x512xbf16>
    %c4 = arith.constant 4 : index
    %c0_19 = arith.constant 0 : index
    %34 = vector.load %arg3[%c4, %c0_19] : memref<9x512xf32, #tpu.memory_space<vmem>>, vector<1x512xf32>
    %cst_20 = arith.constant dense<0.000000e+00> : vector<8x512xf32>
    %35 = tpu.matmul %32, %33, %cst_20 {dimension_numbers = #tpu.dot_dimension_numbers<[1], [0], [0], [1], [0, 0, 1, 1], [], []>} : vector<8x512xbf16>, vector<512x512xbf16>, vector<8x512xf32> -> vector<8x512xf32>
    %36 = vector.broadcast %34 : vector<1x512xf32> to vector<8x512xf32>
    %37 = arith.addf %35, %36 : vector<8x512xf32>
    %cst_21 = arith.constant 0.000000e+00 : f32
    %38 = vector.broadcast %cst_21 : f32 to vector<8x512xf32>
    %39 = arith.maximumf %37, %38 : vector<8x512xf32>
    %40 = arith.truncf %39 : vector<8x512xf32> to vector<8x512xbf16>
    %c1472 = arith.constant 1472 : index
    %c0_22 = arith.constant 0 : index
    %41 = vector.load %arg2[%c1472, %c0_22] : memref<2496x512xbf16, #tpu.memory_space<vmem>>, vector<512x256xbf16>
    %c5 = arith.constant 5 : index
    %c0_23 = arith.constant 0 : index
    %42 = vector.load %arg3[%c5, %c0_23] : memref<9x512xf32, #tpu.memory_space<vmem>>, vector<1x256xf32>
    %cst_24 = arith.constant dense<0.000000e+00> : vector<8x256xf32>
    %43 = tpu.matmul %40, %41, %cst_24 {dimension_numbers = #tpu.dot_dimension_numbers<[1], [0], [0], [1], [0, 0, 1, 1], [], []>} : vector<8x512xbf16>, vector<512x256xbf16>, vector<8x256xf32> -> vector<8x256xf32>
    %44 = vector.broadcast %42 : vector<1x256xf32> to vector<8x256xf32>
    %45 = arith.addf %43, %44 : vector<8x256xf32>
    %cst_25 = arith.constant 0.000000e+00 : f32
    %46 = vector.broadcast %cst_25 : f32 to vector<8x256xf32>
    %47 = arith.maximumf %45, %46 : vector<8x256xf32>
    %48 = arith.truncf %47 : vector<8x256xf32> to vector<8x256xbf16>
    %c1984 = arith.constant 1984 : index
    %c0_26 = arith.constant 0 : index
    %49 = vector.load %arg2[%c1984, %c0_26] : memref<2496x512xbf16, #tpu.memory_space<vmem>>, vector<256x128xbf16>
    %c6 = arith.constant 6 : index
    %c0_27 = arith.constant 0 : index
    %50 = vector.load %arg3[%c6, %c0_27] : memref<9x512xf32, #tpu.memory_space<vmem>>, vector<1x128xf32>
    %cst_28 = arith.constant dense<0.000000e+00> : vector<8x128xf32>
    %51 = tpu.matmul %48, %49, %cst_28 {dimension_numbers = #tpu.dot_dimension_numbers<[1], [0], [0], [1], [0, 0, 1, 1], [], []>} : vector<8x256xbf16>, vector<256x128xbf16>, vector<8x128xf32> -> vector<8x128xf32>
    %52 = vector.broadcast %50 : vector<1x128xf32> to vector<8x128xf32>
    %53 = arith.addf %51, %52 : vector<8x128xf32>
    %cst_29 = arith.constant 0.000000e+00 : f32
    %54 = vector.broadcast %cst_29 : f32 to vector<8x128xf32>
    %55 = arith.maximumf %53, %54 : vector<8x128xf32>
    %56 = arith.truncf %55 : vector<8x128xf32> to vector<8x128xbf16>
    %c2240 = arith.constant 2240 : index
    %c0_30 = arith.constant 0 : index
    %57 = vector.load %arg2[%c2240, %c0_30] : memref<2496x512xbf16, #tpu.memory_space<vmem>>, vector<128x128xbf16>
    %c7 = arith.constant 7 : index
    %c0_31 = arith.constant 0 : index
    %58 = vector.load %arg3[%c7, %c0_31] : memref<9x512xf32, #tpu.memory_space<vmem>>, vector<1x128xf32>
    %cst_32 = arith.constant dense<0.000000e+00> : vector<8x128xf32>
    %59 = tpu.matmul %56, %57, %cst_32 {dimension_numbers = #tpu.dot_dimension_numbers<[1], [0], [0], [1], [0, 0, 1, 1], [], []>} : vector<8x128xbf16>, vector<128x128xbf16>, vector<8x128xf32> -> vector<8x128xf32>
    %60 = vector.broadcast %58 : vector<1x128xf32> to vector<8x128xf32>
    %61 = arith.addf %59, %60 : vector<8x128xf32>
    %cst_33 = arith.constant 0.000000e+00 : f32
    %62 = vector.broadcast %cst_33 : f32 to vector<8x128xf32>
    %63 = arith.maximumf %61, %62 : vector<8x128xf32>
    %64 = arith.truncf %63 : vector<8x128xf32> to vector<8x128xbf16>
    %c2368 = arith.constant 2368 : index
    %c0_34 = arith.constant 0 : index
    %65 = vector.load %arg2[%c2368, %c0_34] : memref<2496x512xbf16, #tpu.memory_space<vmem>>, vector<128x128xbf16>
    %c8 = arith.constant 8 : index
    %c0_35 = arith.constant 0 : index
    %66 = vector.load %arg3[%c8, %c0_35] : memref<9x512xf32, #tpu.memory_space<vmem>>, vector<1x128xf32>
    %cst_36 = arith.constant dense<0.000000e+00> : vector<8x128xf32>
    %67 = tpu.matmul %64, %65, %cst_36 {dimension_numbers = #tpu.dot_dimension_numbers<[1], [0], [0], [1], [0, 0, 1, 1], [], []>} : vector<8x128xbf16>, vector<128x128xbf16>, vector<8x128xf32> -> vector<8x128xf32>
    %68 = vector.broadcast %66 : vector<1x128xf32> to vector<8x128xf32>
    %69 = arith.addf %67, %68 : vector<8x128xf32>
    %cst_37 = arith.constant dense<0xFF800000> : vector<8xf32>
    %70 = vector.multi_reduction <maximumf>, %69, %cst_37 [1] : vector<8x128xf32> to vector<8xf32>
    %71 = vector.shape_cast %70 : vector<8xf32> to vector<8x1xf32>
    %72 = vector.broadcast %71 : vector<8x1xf32> to vector<8x128xf32>
    %73 = arith.subf %69, %72 : vector<8x128xf32>
    %74 = math.exp %73 : vector<8x128xf32>
    %cst_38 = arith.constant dense<0.000000e+00> : vector<8xf32>
    %75 = vector.multi_reduction <add>, %74, %cst_38 [1] : vector<8x128xf32> to vector<8xf32>
    %76 = vector.shape_cast %75 : vector<8xf32> to vector<8x1xf32>
    %77 = math.log %76 : vector<8x1xf32>
    %78 = vector.broadcast %77 : vector<8x1xf32> to vector<8x128xf32>
    %79 = arith.subf %73, %78 : vector<8x128xf32>
    %c0_39 = arith.constant 0 : index
    %c0_40 = arith.constant 0 : index
    %80 = vector.load %arg4[%c0_39, %c0_40] : memref<8x128xf32, #tpu.memory_space<vmem>>, vector<8x128xf32>
    tpu.vector_store %arg4[%c0_39, %c0_40], %79 {strides = array<i32>} : memref<8x128xf32, #tpu.memory_space<vmem>>, vector<8x128xf32>,
    return
  }
  func.func @transform_0(%arg0: i32) -> (i32, i32) {
    %c0_i32 = arith.constant 0 : i32
    %c0_i32_0 = arith.constant 0 : i32
    return %arg0, %c0_i32 : i32, i32
  }
  func.func @transform_1(%arg0: i32) -> (i32, i32) {
    %c0_i32 = arith.constant 0 : i32
    %c0_i32_0 = arith.constant 0 : i32
    %c0_i32_1 = arith.constant 0 : i32
    return %c0_i32, %c0_i32_0 : i32, i32
  }
  func.func @transform_2(%arg0: i32) -> (i32, i32) {
    %c0_i32 = arith.constant 0 : i32
    %c0_i32_0 = arith.constant 0 : i32
    %c0_i32_1 = arith.constant 0 : i32
    return %c0_i32, %c0_i32_0 : i32, i32
  }
  func.func @transform_3(%arg0: i32) -> (i32, i32) {
    %c0_i32 = arith.constant 0 : i32
    %c0_i32_0 = arith.constant 0 : i32
    return %arg0, %c0_i32 : i32, i32
  }
}

</mosaic_0001>

<llo_original>
// kernel: net_forward.1
$region0: #{net_forward.1}
  #allocation0 [shape = 'u32[]', space=smem, size = 0x4, offset = 0x4, fixed_abs, tag = 'smem constant byte address 0x4 - core index']
  #allocation1 [shape = 'u32[72,128]{1,0:T(1,128)}', space=vmem, size = 0x9000, scoped, tag = 'internal scratch']
  %s0 = inlined_call_operand.vmem [shape: bf16[8,64], index: 0, kind: input, shape index: {}]
  %s1 = inlined_call_operand.hbm [shape: bf16[2496,512], index: 1, kind: input, shape index: {}]
  %s2 = inlined_call_operand.hbm [shape: f32[9,512], index: 2, kind: input, shape index: {}]
  %s3 = inlined_call_operand.hbm [shape: f32[8,128], index: 3, kind: output, shape index: {}]
  %s4 = sld [smem:[#allocation0]]
  $region30: #{net_forward.1} parent=0
    _
  %s6 = ssub.s32 1, %s4
  %s7 = scalar_select 0, %s6, %s4
  $region1: #{net_forward.1} parent=0
    #allocation2 [shape = 'u8[2555904]{0}', space=vmem, size = 0x270000, scoped, tag = 'input window, operand 1, single buffered']
    #allocation3 [shape = 's32[1]{0}', space=sflag, size = 0x4, scoped, tag = 'scoped memory for net_forward.1']
    #allocation4 [shape = 's32[1]{0}', space=sflag, size = 0x4, scoped, tag = 'scoped memory for net_forward.1']
    #allocation5 [shape = 'u8[32768]{0}', space=vmem, size = 0x8000, scoped, tag = 'input window, operand 2, single buffered']
    #allocation6 [shape = 's32[1]{0}', space=sflag, size = 0x4, scoped, tag = 'scoped memory for net_forward.1']
    #allocation7 [shape = 'u8[4096]{0}', space=vmem, size = 0x1000, scoped, tag = 'output window, operand 0, single buffered']
    %8 = vsyncpa [#allocation3], 0
    %9 = vsyncpa [#allocation6], 0
    %10 = vsyncpa [#allocation4], 0
    // Predicated region
    $region2: #{net_forward.1} parent=1 // pred_check
      _
    $region3: #{net_forward.1} parent=1 // pred_check_branch
      %12 = sbr.rel (0) target = $region5
    $region4: #{net_forward.1} parent=1 // pred_region
      _
    $region5: #{net_forward.1} parent=1 // pred_fallthru
      _
    // Predicated region
    $region6: #{net_forward.1} parent=1 // pred_check
      _
    $region7: #{net_forward.1} parent=1 // pred_check_branch
      %14 = sbr.rel (0) target = $region9
    $region8: #{net_forward.1} parent=1 // pred_region
      %16 = vsyncadd [#allocation3], 0
      %s17 = sshll.u32 %s1, 4
      %s18 = int_to_ptr.hbm [resolvable:$true] %s17
      %s19 = sshll.u32 [#allocation2], 4
      %s20 = int_to_ptr.vmem [resolvable:$true] %s19
      %25 = dma.hbm_to_vmem [thread:$0]  %s18, 79872, %s20, [#allocation3], 256, 256, 16
    $region9: #{net_forward.1} parent=1 // pred_fallthru
      _
    // Predicated region
    $region10: #{net_forward.1} parent=1 // pred_check
      _
    $region11: #{net_forward.1} parent=1 // pred_check_branch
      %27 = sbr.rel (0) target = $region13
    $region12: #{net_forward.1} parent=1 // pred_region
      %29 = vsyncadd [#allocation6], 0
      %s30 = sshll.u32 %s2, 4
      %s31 = int_to_ptr.hbm [resolvable:$true] %s30
      %s32 = sshll.u32 [#allocation5], 4
      %s33 = int_to_ptr.vmem [resolvable:$true] %s32
      %38 = dma.hbm_to_vmem [thread:$0]  %s31, 1024, %s33, [#allocation6], 512, 512, 32
    $region13: #{net_forward.1} parent=1 // pred_fallthru
      _
    // Predicated region
    $region14: #{net_forward.1} parent=1 // pred_check
      _
    $region15: #{net_forward.1} parent=1 // pred_check_branch
      %40 = sbr.rel (0) target = $region17
    $region16: #{net_forward.1} parent=1 // pred_region
      %42 = dma.done [#allocation3], 79872
    $region17: #{net_forward.1} parent=1 // pred_fallthru
      _
    // Predicated region
    $region18: #{net_forward.1} parent=1 // pred_check
      _
    $region19: #{net_forward.1} parent=1 // pred_check_branch
      %44 = sbr.rel (0) target = $region21
    $region20: #{net_forward.1} parent=1 // pred_region
      %46 = dma.done [#allocation6], 1024
    $region21: #{net_forward.1} parent=1 // pred_fallthru
      _
    %v48 = vld [vmem:[%s0] sm:$0xf]
    %v49 = vld [vmem:[#allocation2] sm:$0xf]
    %v50 = vld [vmem:[#allocation2 + $0x10] sm:$0xf]
    %v51 = vld [vmem:[#allocation2 + $0x20] sm:$0xf]
    %v52 = vld [vmem:[#allocation2 + $0x30] sm:$0xf]
    %v53 = vld [vmem:[#allocation2 + $0x40] sm:$0xf]
    %v54 = vld [vmem:[#allocation2 + $0x50] sm:$0xf]
    %v55 = vld [vmem:[#allocation2 + $0x60] sm:$0xf]
    %v56 = vld [vmem:[#allocation2 + $0x70] sm:$0xf]
    %v57 = vld [vmem:[#allocation5] ss:$0 sm:$0xff]
    %v66 = vunpack.c.l.b16 %v49
    %v67 = vunpack.c.l.b16 %v50
    %v68 = vunpack.c.l.b16 %v51
    %v69 = vunpack.c.l.b16 %v52
    %v70 = vunpack.c.l.b16 %v53
    %v71 = vunpack.c.l.b16 %v54
    %v72 = vunpack.c.l.b16 %v55
    %v73 = vunpack.c.l.b16 %v56
    %v74 = vpack.c.b16 %v67, %v66
    %v75 = vpack.c.b16 %v69, %v68
    %v76 = vpack.c.b16 %v71, %v70
    %v77 = vpack.c.b16 %v73, %v72
    %vm82 = vcmask 523264
    %v84 = vsel %vm82, %v48, 0
    %86 = vmatpush.bf16.msra.mxu0 0
    %87 = vmatpush.bf16.msra.mxu0 0
    %88 = vmatpush.bf16.msra.mxu0 0
    %89 = vmatpush.bf16.msra.mxu0 0
    %90 = vmatpush.bf16.msra.mxu0 %v77
    %91 = vmatpush.bf16.msra.mxu0 %v76
    %92 = vmatpush.bf16.msra.mxu0 %v75
    %93 = vmatpush.bf16.msra.mxu0 %v74
    %94 = vmatmul.bf16.gmra.mxu0 %v84
    %v95 = vpop.f32.mrf.mxu0
    %v96 = vadd.f32 %v57, %v95
    %v97 = vpop.f32.mrf.mxu0
    %98 = vdwg.mxu0
    %v99 = vmax.f32 %v96, 0.0
    %v100 = vpack.c.bf16 %v99, %v99
    %v101 = vld [vmem:[#allocation2 + $0x80] sm:$0xff]
    %v102 = vld [vmem:[#allocation2 + $0x90] sm:$0xff]
    %v103 = vld [vmem:[#allocation2 + $0xa0] sm:$0xff]
    %v104 = vld [vmem:[#allocation2 + $0xb0] sm:$0xff]
    %v105 = vld [vmem:[#allocation2 + $0xc0] sm:$0xff]
    %v106 = vld [vmem:[#allocation2 + $0xd0] sm:$0xff]
    %v107 = vld [vmem:[#allocation2 + $0xe0] sm:$0xff]
    %v108 = vld [vmem:[#allocation2 + $0xf0] sm:$0xff]
    %v109 = vld [vmem:[#allocation2 + $0x100] sm:$0xff]
    %v110 = vld [vmem:[#allocation2 + $0x110] sm:$0xff]
    %v111 = vld [vmem:[#allocation2 + $0x120] sm:$0xff]
    %v112 = vld [vmem:[#allocation2 + $0x130] sm:$0xff]
    %v113 = vld [vmem:[#allocation2 + $0x140] sm:$0xff]
    %v114 = vld [vmem:[#allocation2 + $0x150] sm:$0xff]
    %v115 = vld [vmem:[#allocation2 + $0x160] sm:$0xff]
    %v116 = vld [vmem:[#allocation2 + $0x170] sm:$0xff]
    %s117 = scalar_lea.vmem [#allocation5], 1
    %v118 = vld [vmem:[%s117] ss:$8 sm:$0x3]
    %v120 = vperm.slane %v118, 0
    %v121 = vperm.slane %v118, 1
    %v140 = vunpack.c.l.b16 %v101
    %v141 = vunpack.c.h.b16 %v101
    %v142 = vunpack.c.l.b16 %v102
    %v143 = vunpack.c.h.b16 %v102
    %v144 = vunpack.c.l.b16 %v103
    %v145 = vunpack.c.h.b16 %v103
    %v146 = vunpack.c.l.b16 %v104
    %v147 = vunpack.c.h.b16 %v104
    %v148 = vunpack.c.l.b16 %v105
    %v149 = vunpack.c.h.b16 %v105
    %v150 = vunpack.c.l.b16 %v106
    %v151 = vunpack.c.h.b16 %v106
    %v152 = vunpack.c.l.b16 %v107
    %v153 = vunpack.c.h.b16 %v107
    %v154 = vunpack.c.l.b16 %v108
    %v155 = vunpack.c.h.b16 %v108
    %v156 = vunpack.c.l.b16 %v109
    %v157 = vunpack.c.h.b16 %v109
    %v158 = vunpack.c.l.b16 %v110
    %v159 = vunpack.c.h.b16 %v110
    %v160 = vunpack.c.l.b16 %v111
    %v161 = vunpack.c.h.b16 %v111
    %v162 = vunpack.c.l.b16 %v112
    %v163 = vunpack.c.h.b16 %v112
    %v164 = vunpack.c.l.b16 %v113
    %v165 = vunpack.c.h.b16 %v113
    %v166 = vunpack.c.l.b16 %v114
    %v167 = vunpack.c.h.b16 %v114
    %v168 = vunpack.c.l.b16 %v115
    %v169 = vunpack.c.h.b16 %v115
    %v170 = vunpack.c.l.b16 %v116
    %v171 = vunpack.c.h.b16 %v116
    %v172 = vpack.c.b16 %v142, %v140
    %v173 = vpack.c.b16 %v143, %v141
    %v174 = vpack.c.b16 %v146, %v144
    %v175 = vpack.c.b16 %v147, %v145
    %v176 = vpack.c.b16 %v150, %v148
    %v177 = vpack.c.b16 %v151, %v149
    %v178 = vpack.c.b16 %v154, %v152
    %v179 = vpack.c.b16 %v155, %v153
    %v180 = vpack.c.b16 %v158, %v156
    %v181 = vpack.c.b16 %v159, %v157
    %v182 = vpack.c.b16 %v162, %v160
    %v183 = vpack.c.b16 %v163, %v161
    %v184 = vpack.c.b16 %v166, %v164
    %v185 = vpack.c.b16 %v167, %v165
    %v186 = vpack.c.b16 %v170, %v168
    %v187 = vpack.c.b16 %v171, %v169
    %204 = vmatpush.bf16.msra.mxu0 %v186
    %205 = vmatpush.bf16.msra.mxu0 %v184
    %206 = vmatpush.bf16.msra.mxu0 %v182
    %207 = vmatpush.bf16.msra.mxu0 %v180
    %208 = vmatpush.bf16.msra.mxu0 %v178
    %209 = vmatpush.bf16.msra.mxu0 %v176
    %210 = vmatpush.bf16.msra.mxu0 %v174
    %211 = vmatpush.bf16.msra.mxu0 %v172
    %212 = vmatmul.bf16.gmra.mxu0 %v100
    %v213 = vpop.f32.mrf.mxu0
    %v214 = vadd.f32 %v120, %v213
    %v215 = vpop.f32.mrf.mxu0
    %216 = vdwg.mxu0
    %217 = vmatpush.bf16.msra.mxu0 %v187
    %218 = vmatpush.bf16.msra.mxu0 %v185
    %219 = vmatpush.bf16.msra.mxu0 %v183
    %220 = vmatpush.bf16.msra.mxu0 %v181
    %221 = vmatpush.bf16.msra.mxu0 %v179
    %222 = vmatpush.bf16.msra.mxu0 %v177
    %223 = vmatpush.bf16.msra.mxu0 %v175
    %224 = vmatpush.bf16.msra.mxu0 %v173
    %225 = vmatmul.bf16.gmra.mxu0 %v100
    %v226 = vpop.f32.mrf.mxu0
    %v227 = vadd.f32 %v121, %v226
    %v228 = vpop.f32.mrf.mxu0
    %229 = vdwg.mxu0
    %v230 = vmax.f32 %v214, 0.0
    %v231 = vmax.f32 %v227, 0.0
    %v232 = vpack.c.bf16 %v230, %v230
    %v233 = vpack.c.bf16 %v231, %v231
    %v234 = vld [vmem:[#allocation2 + $0x180] sm:$0xff]
    %v235 = vld [vmem:[#allocation2 + $0x188] sm:$0xff]
    %v236 = vld [vmem:[#allocation2 + $0x190] sm:$0xff]
    %v237 = vld [vmem:[#allocation2 + $0x198] sm:$0xff]
    %v238 = vld [vmem:[#allocation2 + $0x1a0] sm:$0xff]
    %v239 = vld [vmem:[#allocation2 + $0x1a8] sm:$0xff]
    %v240 = vld [vmem:[#allocation2 + $0x1b0] sm:$0xff]
    %v241 = vld [vmem:[#allocation2 + $0x1b8] sm:$0xff]
    %v242 = vld [vmem:[#allocation2 + $0x1c0] sm:$0xff]
    %v243 = vld [vmem:[#allocation2 + $0x1c8] sm:$0xff]
    %v244 = vld [vmem:[#allocation2 + $0x1d0] sm:$0xff]
    %v245 = vld [vmem:[#allocation2 + $0x1d8] sm:$0xff]
    %v246 = vld [vmem:[#allocation2 + $0x1e0] sm:$0xff]
    %v247 = vld [vmem:[#allocation2 + $0x1e8] sm:$0xff]
    %v248 = vld [vmem:[#allocation2 + $0x1f0] sm:$0xff]
    %v249 = vld [vmem:[#allocation2 + $0x1f8] sm:$0xff]
    %v250 = vld [vmem:[#allocation2 + $0x200] sm:$0xff]
    %v251 = vld [vmem:[#allocation2 + $0x208] sm:$0xff]
    %v252 = vld [vmem:[#allocation2 + $0x210] sm:$0xff]
    %v253 = vld [vmem:[#allocation2 + $0x218] sm:$0xff]
    %v254 = vld [vmem:[#allocation2 + $0x220] sm:$0xff]
    %v255 = vld [vmem:[#allocation2 + $0x228] sm:$0xff]
    %v256 = vld [vmem:[#allocation2 + $0x230] sm:$0xff]
    %v257 = vld [vmem:[#allocation2 + $0x238] sm:$0xff]
    %v258 = vld [vmem:[#allocation2 + $0x240] sm:$0xff]
    %v259 = vld [vmem:[#allocation2 + $0x248] sm:$0xff]
    %v260 = vld [vmem:[#allocation2 + $0x250] sm:$0xff]
    %v261 = vld [vmem:[#allocation2 + $0x258] sm:$0xff]
    %v262 = vld [vmem:[#allocation2 + $0x260] sm:$0xff]
    %v263 = vld [vmem:[#allocation2 + $0x268] sm:$0xff]
    %v264 = vld [vmem:[#allocation2 + $0x270] sm:$0xff]
    %v265 = vld [vmem:[#allocation2 + $0x278] sm:$0xff]
    %v266 = vld [vmem:[#allocation2 + $0x280] sm:$0xff]
    %v267 = vld [vmem:[#allocation2 + $0x288] sm:$0xff]
    %v268 = vld [vmem:[#allocation2 + $0x290] sm:$0xff]
    %v269 = vld [vmem:[#allocation2 + $0x298] sm:$0xff]
    %v270 = vld [vmem:[#allocation2 + $0x2a0] sm:$0xff]
    %v271 = vld [vmem:[#allocation2 + $0x2a8] sm:$0xff]
    %v272 = vld [vmem:[#allocation2 + $0x2b0] sm:$0xff]
    %v273 = vld [vmem:[#allocation2 + $0x2b8] sm:$0xff]
    %v274 = vld [vmem:[#allocation2 + $0x2c0] sm:$0xff]
    %v275 = vld [vmem:[#allocation2 + $0x2c8] sm:$0xff]
    %v276 = vld [vmem:[#allocation2 + $0x2d0] sm:$0xff]
    %v277 = vld [vmem:[#allocation2 + $0x2d8] sm:$0xff]
    %v278 = vld [vmem:[#allocation2 + $0x2e0] sm:$0xff]
    %v279 = vld [vmem:[#allocation2 + $0x2e8] sm:$0xff]
    %v280 = vld [vmem:[#allocation2 + $0x2f0] sm:$0xff]
    %v281 = vld [vmem:[#allocation2 + $0x2f8] sm:$0xff]
    %v282 = vld [vmem:[#allocation2 + $0x300] sm:$0xff]
    %v283 = vld [vmem:[#allocation2 + $0x308] sm:$0xff]
    %v284 = vld [vmem:[#allocation2 + $0x310] sm:$0xff]
    %v285 = vld [vmem:[#allocation2 + $0x318] sm:$0xff]
    %v286 = vld [vmem:[#allocation2 + $0x320] sm:$0xff]
    %v287 = vld [vmem:[#allocation2 + $0x328] sm:$0xff]
    %v288 = vld [vmem:[#allocation2 + $0x330] sm:$0xff]
    %v289 = vld [vmem:[#allocation2 + $0x338] sm:$0xff]
    %v290 = vld [vmem:[#allocation2 + $0x340] sm:$0xff]
    %v291 = vld [vmem:[#allocation2 + $0x348] sm:$0xff]
    %v292 = vld [vmem:[#allocation2 + $0x350] sm:$0xff]
    %v293 = vld [vmem:[#allocation2 + $0x358] sm:$0xff]
    %v294 = vld [vmem:[#allocation2 + $0x360] sm:$0xff]
    %v295 = vld [vmem:[#allocation2 + $0x368] sm:$0xff]
    %v296 = vld [vmem:[#allocation2 + $0x370] sm:$0xff]
    %v297 = vld [vmem:[#allocation2 + $0x378] sm:$0xff]
    %s298 = scalar_lea.vmem [#allocation5], 2
    %v299 = vld [vmem:[%s298] ss:$8 sm:$0xf]
    %v301 = vperm.slane %v299, 0
    %v302 = vperm.slane %v299, 1
    %v303 = vperm.slane %v299, 2
    %v304 = vperm.slane %v299, 3
    %v373 = vunpack.c.l.b16 %v234
    %v374 = vunpack.c.h.b16 %v234
    %v375 = vunpack.c.l.b16 %v235
    %v376 = vunpack.c.h.b16 %v235
    %v377 = vunpack.c.l.b16 %v236
    %v378 = vunpack.c.h.b16 %v236
    %v379 = vunpack.c.l.b16 %v237
    %v380 = vunpack.c.h.b16 %v237
    %v381 = vunpack.c.l.b16 %v238
    %v382 = vunpack.c.h.b16 %v238
    %v383 = vunpack.c.l.b16 %v239
    %v384 = vunpack.c.h.b16 %v239
    %v385 = vunpack.c.l.b16 %v240
    %v386 = vunpack.c.h.b16 %v240
    %v387 = vunpack.c.l.b16 %v241
    %v388 = vunpack.c.h.b16 %v241
    %v389 = vunpack.c.l.b16 %v242
    %v390 = vunpack.c.h.b16 %v242
    %v391 = vunpack.c.l.b16 %v243
    %v392 = vunpack.c.h.b16 %v243
    %v393 = vunpack.c.l.b16 %v244
    %v394 = vunpack.c.h.b16 %v244
    %v395 = vunpack.c.l.b16 %v245
    %v396 = vunpack.c.h.b16 %v245
    %v397 = vunpack.c.l.b16 %v246
    %v398 = vunpack.c.h.b16 %v246
    %v399 = vunpack.c.l.b16 %v247
    %v400 = vunpack.c.h.b16 %v247
    %v401 = vunpack.c.l.b16 %v248
    %v402 = vunpack.c.h.b16 %v248
    %v403 = vunpack.c.l.b16 %v249
    %v404 = vunpack.c.h.b16 %v249
    %v405 = vunpack.c.l.b16 %v250
    %v406 = vunpack.c.h.b16 %v250
    %v407 = vunpack.c.l.b16 %v251
    %v408 = vunpack.c.h.b16 %v251
    %v409 = vunpack.c.l.b16 %v252
    %v410 = vunpack.c.h.b16 %v252
    %v411 = vunpack.c.l.b16 %v253
    %v412 = vunpack.c.h.b16 %v253
    %v413 = vunpack.c.l.b16 %v254
    %v414 = vunpack.c.h.b16 %v254
    %v415 = vunpack.c.l.b16 %v255
    %v416 = vunpack.c.h.b16 %v255
    %v417 = vunpack.c.l.b16 %v256
    %v418 = vunpack.c.h.b16 %v256
    %v419 = vunpack.c.l.b16 %v257
    %v420 = vunpack.c.h.b16 %v257
    %v421 = vunpack.c.l.b16 %v258
    %v422 = vunpack.c.h.b16 %v258
    %v423 = vunpack.c.l.b16 %v259
    %v424 = vunpack.c.h.b16 %v259
    %v425 = vunpack.c.l.b16 %v260
    %v426 = vunpack.c.h.b16 %v260
    %v427 = vunpack.c.l.b16 %v261
    %v428 = vunpack.c.h.b16 %v261
    %v429 = vunpack.c.l.b16 %v262
    %v430 = vunpack.c.h.b16 %v262
    %v431 = vunpack.c.l.b16 %v263
    %v432 = vunpack.c.h.b16 %v263
    %v433 = vunpack.c.l.b16 %v264
    %v434 = vunpack.c.h.b16 %v264
    %v435 = vunpack.c.l.b16 %v265
    %v436 = vunpack.c.h.b16 %v265
    %v437 = vunpack.c.l.b16 %v266
    %v438 = vunpack.c.h.b16 %v266
    %v439 = vunpack.c.l.b16 %v267
    %v440 = vunpack.c.h.b16 %v267
    %v441 = vunpack.c.l.b16 %v268
    %v442 = vunpack.c.h.b16 %v268
    %v443 = vunpack.c.l.b16 %v269
    %v444 = vunpack.c.h.b16 %v269
    %v445 = vunpack.c.l.b16 %v270
    %v446 = vunpack.c.h.b16 %v270
    %v447 = vunpack.c.l.b16 %v271
    %v448 = vunpack.c.h.b16 %v271
    %v449 = vunpack.c.l.b16 %v272
    %v450 = vunpack.c.h.b16 %v272
    %v451 = vunpack.c.l.b16 %v273
    %v452 = vunpack.c.h.b16 %v273
    %v453 = vunpack.c.l.b16 %v274
    %v454 = vunpack.c.h.b16 %v274
    %v455 = vunpack.c.l.b16 %v275
    %v456 = vunpack.c.h.b16 %v275
    %v457 = vunpack.c.l.b16 %v276
    %v458 = vunpack.c.h.b16 %v276
    %v459 = vunpack.c.l.b16 %v277
    %v460 = vunpack.c.h.b16 %v277
    %v461 = vunpack.c.l.b16 %v278
    %v462 = vunpack.c.h.b16 %v278
    %v463 = vunpack.c.l.b16 %v279
    %v464 = vunpack.c.h.b16 %v279
    %v465 = vunpack.c.l.b16 %v280
    %v466 = vunpack.c.h.b16 %v280
    %v467 = vunpack.c.l.b16 %v281
    %v468 = vunpack.c.h.b16 %v281
    %v469 = vunpack.c.l.b16 %v282
    %v470 = vunpack.c.h.b16 %v282
    %v471 = vunpack.c.l.b16 %v283
    %v472 = vunpack.c.h.b16 %v283
    %v473 = vunpack.c.l.b16 %v284
    %v474 = vunpack.c.h.b16 %v284
    %v475 = vunpack.c.l.b16 %v285
    %v476 = vunpack.c.h.b16 %v285
    %v477 = vunpack.c.l.b16 %v286
    %v478 = vunpack.c.h.b16 %v286
    %v479 = vunpack.c.l.b16 %v287
    %v480 = vunpack.c.h.b16 %v287
    %v481 = vunpack.c.l.b16 %v288
    %v482 = vunpack.c.h.b16 %v288
    %v483 = vunpack.c.l.b16 %v289
    %v484 = vunpack.c.h.b16 %v289
    %v485 = vunpack.c.l.b16 %v290
    %v486 = vunpack.c.h.b16 %v290
    %v487 = vunpack.c.l.b16 %v291
    %v488 = vunpack.c.h.b16 %v291
    %v489 = vunpack.c.l.b16 %v292
    %v490 = vunpack.c.h.b16 %v292
    %v491 = vunpack.c.l.b16 %v293
    %v492 = vunpack.c.h.b16 %v293
    %v493 = vunpack.c.l.b16 %v294
    %v494 = vunpack.c.h.b16 %v294
    %v495 = vunpack.c.l.b16 %v295
    %v496 = vunpack.c.h.b16 %v295
    %v497 = vunpack.c.l.b16 %v296
    %v498 = vunpack.c.h.b16 %v296
    %v499 = vunpack.c.l.b16 %v297
    %v500 = vunpack.c.h.b16 %v297
    %v501 = vpack.c.b16 %v377, %v373
    %v502 = vpack.c.b16 %v378, %v374
    %v503 = vpack.c.b16 %v379, %v375
    %v504 = vpack.c.b16 %v380, %v376
    %v505 = vpack.c.b16 %v385, %v381
    %v506 = vpack.c.b16 %v386, %v382
    %v507 = vpack.c.b16 %v387, %v383
    %v508 = vpack.c.b16 %v388, %v384
    %v509 = vpack.c.b16 %v393, %v389
    %v510 = vpack.c.b16 %v394, %v390
    %v511 = vpack.c.b16 %v395, %v391
    %v512 = vpack.c.b16 %v396, %v392
    %v513 = vpack.c.b16 %v401, %v397
    %v514 = vpack.c.b16 %v402, %v398
    %v515 = vpack.c.b16 %v403, %v399
    %v516 = vpack.c.b16 %v404, %v400
    %v517 = vpack.c.b16 %v409, %v405
    %v518 = vpack.c.b16 %v410, %v406
    %v519 = vpack.c.b16 %v411, %v407
    %v520 = vpack.c.b16 %v412, %v408
    %v521 = vpack.c.b16 %v417, %v413
    %v522 = vpack.c.b16 %v418, %v414
    %v523 = vpack.c.b16 %v419, %v415
    %v524 = vpack.c.b16 %v420, %v416
    %v525 = vpack.c.b16 %v425, %v421
    %v526 = vpack.c.b16 %v426, %v422
    %v527 = vpack.c.b16 %v427, %v423
    %v528 = vpack.c.b16 %v428, %v424
    %v529 = vpack.c.b16 %v433, %v429
    %v530 = vpack.c.b16 %v434, %v430
    %v531 = vpack.c.b16 %v435, %v431
    %v532 = vpack.c.b16 %v436, %v432
    %v533 = vpack.c.b16 %v441, %v437
    %v534 = vpack.c.b16 %v442, %v438
    %v535 = vpack.c.b16 %v443, %v439
    %v536 = vpack.c.b16 %v444, %v440
    %v537 = vpack.c.b16 %v449, %v445
    %v538 = vpack.c.b16 %v450, %v446
    %v539 = vpack.c.b16 %v451, %v447
    %v540 = vpack.c.b16 %v452, %v448
    %v541 = vpack.c.b16 %v457, %v453
    %v542 = vpack.c.b16 %v458, %v454
    %v543 = vpack.c.b16 %v459, %v455
    %v544 = vpack.c.b16 %v460, %v456
    %v545 = vpack.c.b16 %v465, %v461
    %v546 = vpack.c.b16 %v466, %v462
    %v547 = vpack.c.b16 %v467, %v463
    %v548 = vpack.c.b16 %v468, %v464
    %v549 = vpack.c.b16 %v473, %v469
    %v550 = vpack.c.b16 %v474, %v470
    %v551 = vpack.c.b16 %v475, %v471
    %v552 = vpack.c.b16 %v476, %v472
    %v553 = vpack.c.b16 %v481, %v477
    %v554 = vpack.c.b16 %v482, %v478
    %v555 = vpack.c.b16 %v483, %v479
    %v556 = vpack.c.b16 %v484, %v480
    %v557 = vpack.c.b16 %v489, %v485
    %v558 = vpack.c.b16 %v490, %v486
    %v559 = vpack.c.b16 %v491, %v487
    %v560 = vpack.c.b16 %v492, %v488
    %v561 = vpack.c.b16 %v497, %v493
    %v562 = vpack.c.b16 %v498, %v494
    %v563 = vpack.c.b16 %v499, %v495
    %v564 = vpack.c.b16 %v500, %v496
    %629 = vmatpush.bf16.msra.mxu0 %v529
    %630 = vmatpush.bf16.msra.mxu0 %v525
    %631 = vmatpush.bf16.msra.mxu0 %v521
    %632 = vmatpush.bf16.msra.mxu0 %v517
    %633 = vmatpush.bf16.msra.mxu0 %v513
    %634 = vmatpush.bf16.msra.mxu0 %v509
    %635 = vmatpush.bf16.msra.mxu0 %v505
    %636 = vmatpush.bf16.msra.mxu0 %v501
    %637 = vmatmul.bf16.gmra.mxu0 %v232
    %v638 = vpop.f32.mrf.mxu0
    %v639 = vadd.f32 %v301, %v638
    %v640 = vpop.f32.mrf.mxu0
    %641 = vdwg.mxu0
    %642 = vmatpush.bf16.msra.mxu0 %v561
    %643 = vmatpush.bf16.msra.mxu0 %v557
    %644 = vmatpush.bf16.msra.mxu0 %v553
    %645 = vmatpush.bf16.msra.mxu0 %v549
    %646 = vmatpush.bf16.msra.mxu0 %v545
    %647 = vmatpush.bf16.msra.mxu0 %v541
    %648 = vmatpush.bf16.msra.mxu0 %v537
    %649 = vmatpush.bf16.msra.mxu0 %v533
    %650 = vmatmul.bf16.gmra.mxu0 %v233
    %v651 = vpop.f32.mrf.mxu0
    %v652 = vadd.f32 %v639, %v651
    %v653 = vpop.f32.mrf.mxu0
    %654 = vdwg.mxu0
    %655 = vmatpush.bf16.msra.mxu0 %v530
    %656 = vmatpush.bf16.msra.mxu0 %v526
    %657 = vmatpush.bf16.msra.mxu0 %v522
    %658 = vmatpush.bf16.msra.mxu0 %v518
    %659 = vmatpush.bf16.msra.mxu0 %v514
    %660 = vmatpush.bf16.msra.mxu0 %v510
    %661 = vmatpush.bf16.msra.mxu0 %v506
    %662 = vmatpush.bf16.msra.mxu0 %v502
    %663 = vmatmul.bf16.gmra.mxu0 %v232
    %v664 = vpop.f32.mrf.mxu0
    %v665 = vadd.f32 %v302, %v664
    %v666 = vpop.f32.mrf.mxu0
    %667 = vdwg.mxu0
    %668 = vmatpush.bf16.msra.mxu0 %v562
    %669 = vmatpush.bf16.msra.mxu0 %v558
    %670 = vmatpush.bf16.msra.mxu0 %v554
    %671 = vmatpush.bf16.msra.mxu0 %v550
    %672 = vmatpush.bf16.msra.mxu0 %v546
    %673 = vmatpush.bf16.msra.mxu0 %v542
    %674 = vmatpush.bf16.msra.mxu0 %v538
    %675 = vmatpush.bf16.msra.mxu0 %v534
    %676 = vmatmul.bf16.gmra.mxu0 %v233
    %v677 = vpop.f32.mrf.mxu0
    %v678 = vadd.f32 %v665, %v677
    %v679 = vpop.f32.mrf.mxu0
    %680 = vdwg.mxu0
    %681 = vmatpush.bf16.msra.mxu0 %v531
    %682 = vmatpush.bf16.msra.mxu0 %v527
    %683 = vmatpush.bf16.msra.mxu0 %v523
    %684 = vmatpush.bf16.msra.mxu0 %v519
    %685 = vmatpush.bf16.msra.mxu0 %v515
    %686 = vmatpush.bf16.msra.mxu0 %v511
    %687 = vmatpush.bf16.msra.mxu0 %v507
    %688 = vmatpush.bf16.msra.mxu0 %v503
    %689 = vmatmul.bf16.gmra.mxu0 %v232
    %v690 = vpop.f32.mrf.mxu0
    %v691 = vadd.f32 %v303, %v690
    %v692 = vpop.f32.mrf.mxu0
    %693 = vdwg.mxu0
    %694 = vmatpush.bf16.msra.mxu0 %v563
    %695 = vmatpush.bf16.msra.mxu0 %v559
    %696 = vmatpush.bf16.msra.mxu0 %v555
    %697 = vmatpush.bf16.msra.mxu0 %v551
    %698 = vmatpush.bf16.msra.mxu0 %v547
    %699 = vmatpush.bf16.msra.mxu0 %v543
    %700 = vmatpush.bf16.msra.mxu0 %v539
    %701 = vmatpush.bf16.msra.mxu0 %v535
    %702 = vmatmul.bf16.gmra.mxu0 %v233
    %v703 = vpop.f32.mrf.mxu0
    %v704 = vadd.f32 %v691, %v703
    %v705 = vpop.f32.mrf.mxu0
    %706 = vdwg.mxu0
    %707 = vmatpush.bf16.msra.mxu0 %v532
    %708 = vmatpush.bf16.msra.mxu0 %v528
    %709 = vmatpush.bf16.msra.mxu0 %v524
    %710 = vmatpush.bf16.msra.mxu0 %v520
    %711 = vmatpush.bf16.msra.mxu0 %v516
    %712 = vmatpush.bf16.msra.mxu0 %v512
    %713 = vmatpush.bf16.msra.mxu0 %v508
    %714 = vmatpush.bf16.msra.mxu0 %v504
    %715 = vmatmul.bf16.gmra.mxu0 %v232
    %v716 = vpop.f32.mrf.mxu0
    %v717 = vadd.f32 %v304, %v716
    %v718 = vpop.f32.mrf.mxu0
    %719 = vdwg.mxu0
    %720 = vmatpush.bf16.msra.mxu0 %v564
    %721 = vmatpush.bf16.msra.mxu0 %v560
    %722 = vmatpush.bf16.msra.mxu0 %v556
    %723 = vmatpush.bf16.msra.mxu0 %v552
    %724 = vmatpush.bf16.msra.mxu0 %v548
    %725 = vmatpush.bf16.msra.mxu0 %v544
    %726 = vmatpush.bf16.msra.mxu0 %v540
    %727 = vmatpush.bf16.msra.mxu0 %v536
    %728 = vmatmul.bf16.gmra.mxu0 %v233
    %v729 = vpop.f32.mrf.mxu0
    %v730 = vadd.f32 %v717, %v729
    %v731 = vpop.f32.mrf.mxu0
    %732 = vdwg.mxu0
    %v733 = vmax.f32 %v652, 0.0
    %v734 = vmax.f32 %v678, 0.0
    %v735 = vmax.f32 %v704, 0.0
    %v736 = vmax.f32 %v730, 0.0
    %v737 = vpack.c.bf16 %v733, %v733
    %v738 = vpack.c.bf16 %v734, %v734
    %v739 = vpack.c.bf16 %v735, %v735
    %v740 = vpack.c.bf16 %v736, %v736
    %v741 = vld [vmem:[#allocation2 + $0x380] sm:$0xff]
    %v742 = vld [vmem:[#allocation2 + $0x388] sm:$0xff]
    %v743 = vld [vmem:[#allocation2 + $0x390] sm:$0xff]
    %v744 = vld [vmem:[#allocation2 + $0x398] sm:$0xff]
    %v745 = vld [vmem:[#allocation2 + $0x3a0] sm:$0xff]
    %v746 = vld [vmem:[#allocation2 + $0x3a8] sm:$0xff]
    %v747 = vld [vmem:[#allocation2 + $0x3b0] sm:$0xff]
    %v748 = vld [vmem:[#allocation2 + $0x3b8] sm:$0xff]
    %v749 = vld [vmem:[#allocation2 + $0x3c0] sm:$0xff]
    %v750 = vld [vmem:[#allocation2 + $0x3c8] sm:$0xff]
    %v751 = vld [vmem:[#allocation2 + $0x3d0] sm:$0xff]
    %v752 = vld [vmem:[#allocation2 + $0x3d8] sm:$0xff]
    %v753 = vld [vmem:[#allocation2 + $0x3e0] sm:$0xff]
    %v754 = vld [vmem:[#allocation2 + $0x3e8] sm:$0xff]
    %v755 = vld [vmem:[#allocation2 + $0x3f0] sm:$0xff]
    %v756 = vld [vmem:[#allocation2 + $0x3f8] sm:$0xff]
    %v757 = vld [vmem:[#allocation2 + $0x400] sm:$0xff]
    %v758 = vld [vmem:[#allocation2 + $0x408] sm:$0xff]
    %v759 = vld [vmem:[#allocation2 + $0x410] sm:$0xff]
    %v760 = vld [vmem:[#allocation2 + $0x418] sm:$0xff]
    %v761 = vld [vmem:[#allocation2 + $0x420] sm:$0xff]
    %v762 = vld [vmem:[#allocation2 + $0x428] sm:$0xff]
    %v763 = vld [vmem:[#allocation2 + $0x430] sm:$0xff]
    %v764 = vld [vmem:[#allocation2 + $0x438] sm:$0xff]
    %v765 = vld [vmem:[#allocation2 + $0x440] sm:$0xff]
    %v766 = vld [vmem:[#allocation2 + $0x448] sm:$0xff]
    %v767 = vld [vmem:[#allocation2 + $0x450] sm:$0xff]
    %v768 = vld [vmem:[#allocation2 + $0x458] sm:$0xff]
    %v769 = vld [vmem:[#allocation2 + $0x460] sm:$0xff]
    %v770 = vld [vmem:[#allocation2 + $0x468] sm:$0xff]
    %v771 = vld [vmem:[#allocation2 + $0x470] sm:$0xff]
    %v772 = vld [vmem:[#allocation2 + $0x478] sm:$0xff]
    %v773 = vld [vmem:[#allocation2 + $0x480] sm:$0xff]
    %v774 = vld [vmem:[#allocation2 + $0x488] sm:$0xff]
    %v775 = vld [vmem:[#allocation2 + $0x490] sm:$0xff]
    %v776 = vld [vmem:[#allocation2 + $0x498] sm:$0xff]
    %v777 = vld [vmem:[#allocation2 + $0x4a0] sm:$0xff]
    %v778 = vld [vmem:[#allocation2 + $0x4a8] sm:$0xff]
    %v779 = vld [vmem:[#allocation2 + $0x4b0] sm:$0xff]
    %v780 = vld [vmem:[#allocation2 + $0x4b8] sm:$0xff]
    %v781 = vld [vmem:[#allocation2 + $0x4c0] sm:$0xff]
    %v782 = vld [vmem:[#allocation2 + $0x4c8] sm:$0xff]
    %v783 = vld [vmem:[#allocation2 + $0x4d0] sm:$0xff]
    %v784 = vld [vmem:[#allocation2 + $0x4d8] sm:$0xff]
    %v785 = vld [vmem:[#allocation2 + $0x4e0] sm:$0xff]
    %v786 = vld [vmem:[#allocation2 + $0x4e8] sm:$0xff]
    %v787 = vld [vmem:[#allocation2 + $0x4f0] sm:$0xff]
    %v788 = vld [vmem:[#allocation2 + $0x4f8] sm:$0xff]
    %v789 = vld [vmem:[#allocation2 + $0x500] sm:$0xff]
    %v790 = vld [vmem:[#allocation2 + $0x508] sm:$0xff]
    %v791 = vld [vmem:[#allocation2 + $0x510] sm:$0xff]
    %v792 = vld [vmem:[#allocation2 + $0x518] sm:$0xff]
    %v793 = vld [vmem:[#allocation2 + $0x520] sm:$0xff]
    %v794 = vld [vmem:[#allocation2 + $0x528] sm:$0xff]
    %v795 = vld [vmem:[#allocation2 + $0x530] sm:$0xff]
    %v796 = vld [vmem:[#allocation2 + $0x538] sm:$0xff]
    %v797 = vld [vmem:[#allocation2 + $0x540] sm:$0xff]
    %v798 = vld [vmem:[#allocation2 + $0x548] sm:$0xff]
    %v799 = vld [vmem:[#allocation2 + $0x550] sm:$0xff]
    %v800 = vld [vmem:[#allocation2 + $0x558] sm:$0xff]
    %v801 = vld [vmem:[#allocation2 + $0x560] sm:$0xff]
    %v802 = vld [vmem:[#allocation2 + $0x568] sm:$0xff]
    %v803 = vld [vmem:[#allocation2 + $0x570] sm:$0xff]
    %v804 = vld [vmem:[#allocation2 + $0x578] sm:$0xff]
    %v805 = vld [vmem:[#allocation2 + $0x580] sm:$0xff]
    %v806 = vld [vmem:[#allocation2 + $0x588] sm:$0xff]
    %v807 = vld [vmem:[#allocation2 + $0x590] sm:$0xff]
    %v808 = vld [vmem:[#allocation2 + $0x598] sm:$0xff]
    %v809 = vld [vmem:[#allocation2 + $0x5a0] sm:$0xff]
    %v810 = vld [vmem:[#allocation2 + $0x5a8] sm:$0xff]
    %v811 = vld [vmem:[#allocation2 + $0x5b0] sm:$0xff]
    %v812 = vld [vmem:[#allocation2 + $0x5b8] sm:$0xff]
    %v813 = vld [vmem:[#allocation2 + $0x5c0] sm:$0xff]
    %v814 = vld [vmem:[#allocation2 + $0x5c8] sm:$0xff]
    %v815 = vld [vmem:[#allocation2 + $0x5d0] sm:$0xff]
    %v816 = vld [vmem:[#allocation2 + $0x5d8] sm:$0xff]
    %v817 = vld [vmem:[#allocation2 + $0x5e0] sm:$0xff]
    %v818 = vld [vmem:[#allocation2 + $0x5e8] sm:$0xff]
    %v819 = vld [vmem:[#allocation2 + $0x5f0] sm:$0xff]
    %v820 = vld [vmem:[#allocation2 + $0x5f8] sm:$0xff]
    %v821 = vld [vmem:[#allocation2 + $0x600] sm:$0xff]
    %v822 = vld [vmem:[#allocation2 + $0x608] sm:$0xff]
    %v823 = vld [vmem:[#allocation2 + $0x610] sm:$0xff]
    %v824 = vld [vmem:[#allocation2 + $0x618] sm:$0xff]
    %v825 = vld [vmem:[#allocation2 + $0x620] sm:$0xff]
    %v826 = vld [vmem:[#allocation2 + $0x628] sm:$0xff]
    %v827 = vld [vmem:[#allocation2 + $0x630] sm:$0xff]
    %v828 = vld [vmem:[#allocation2 + $0x638] sm:$0xff]
    %v829 = vld [vmem:[#allocation2 + $0x640] sm:$0xff]
    %v830 = vld [vmem:[#allocation2 + $0x648] sm:$0xff]
    %v831 = vld [vmem:[#allocation2 + $0x650] sm:$0xff]
    %v832 = vld [vmem:[#allocation2 + $0x658] sm:$0xff]
    %v833 = vld [vmem:[#allocation2 + $0x660] sm:$0xff]
    %v834 = vld [vmem:[#allocation2 + $0x668] sm:$0xff]
    %v835 = vld [vmem:[#allocation2 + $0x670] sm:$0xff]
    %v836 = vld [vmem:[#allocation2 + $0x678] sm:$0xff]
    %v837 = vld [vmem:[#allocation2 + $0x680] sm:$0xff]
    %v838 = vld [vmem:[#allocation2 + $0x688] sm:$0xff]
    %v839 = vld [vmem:[#allocation2 + $0x690] sm:$0xff]
    %v840 = vld [vmem:[#allocation2 + $0x698] sm:$0xff]
    %v841 = vld [vmem:[#allocation2 + $0x6a0] sm:$0xff]
    %v842 = vld [vmem:[#allocation2 + $0x6a8] sm:$0xff]
    %v843 = vld [vmem:[#allocation2 + $0x6b0] sm:$0xff]
    %v844 = vld [vmem:[#allocation2 + $0x6b8] sm:$0xff]
    %v845 = vld [vmem:[#allocation2 + $0x6c0] sm:$0xff]
    %v846 = vld [vmem:[#allocation2 + $0x6c8] sm:$0xff]
    %v847 = vld [vmem:[#allocation2 + $0x6d0] sm:$0xff]
    %v848 = vld [vmem:[#allocation2 + $0x6d8] sm:$0xff]
    %v849 = vld [vmem:[#allocation2 + $0x6e0] sm:$0xff]
    %v850 = vld [vmem:[#allocation2 + $0x6e8] sm:$0xff]
    %v851 = vld [vmem:[#allocation2 + $0x6f0] sm:$0xff]
    %v852 = vld [vmem:[#allocation2 + $0x6f8] sm:$0xff]
    %v853 = vld [vmem:[#allocation2 + $0x700] sm:$0xff]
    %v854 = vld [vmem:[#allocation2 + $0x708] sm:$0xff]
    %v855 = vld [vmem:[#allocation2 + $0x710] sm:$0xff]
    %v856 = vld [vmem:[#allocation2 + $0x718] sm:$0xff]
    %v857 = vld [vmem:[#allocation2 + $0x720] sm:$0xff]
    %v858 = vld [vmem:[#allocation2 + $0x728] sm:$0xff]
    %v859 = vld [vmem:[#allocation2 + $0x730] sm:$0xff]
    %v860 = vld [vmem:[#allocation2 + $0x738] sm:$0xff]
    %v861 = vld [vmem:[#allocation2 + $0x740] sm:$0xff]
    %v862 = vld [vmem:[#allocation2 + $0x748] sm:$0xff]
    %v863 = vld [vmem:[#allocation2 + $0x750] sm:$0xff]
    %v864 = vld [vmem:[#allocation2 + $0x758] sm:$0xff]
    %v865 = vld [vmem:[#allocation2 + $0x760] sm:$0xff]
    %v866 = vld [vmem:[#allocation2 + $0x768] sm:$0xff]
    %v867 = vld [vmem:[#allocation2 + $0x770] sm:$0xff]
    %v868 = vld [vmem:[#allocation2 + $0x778] sm:$0xff]
    %s869 = scalar_lea.vmem [#allocation5], 3
    %v870 = vld [vmem:[%s869] ss:$8 sm:$0xf]
    %v872 = vperm.slane %v870, 0
    %v873 = vperm.slane %v870, 1
    %v874 = vperm.slane %v870, 2
    %v875 = vperm.slane %v870, 3
    %v1008 = vunpack.c.l.b16 %v741
    %v1009 = vunpack.c.h.b16 %v741
    %v1010 = vunpack.c.l.b16 %v742
    %v1011 = vunpack.c.h.b16 %v742
    %v1012 = vunpack.c.l.b16 %v743
    %v1013 = vunpack.c.h.b16 %v743
    %v1014 = vunpack.c.l.b16 %v744
    %v1015 = vunpack.c.h.b16 %v744
    %v1016 = vunpack.c.l.b16 %v745
    %v1017 = vunpack.c.h.b16 %v745
    %v1018 = vunpack.c.l.b16 %v746
    %v1019 = vunpack.c.h.b16 %v746
    %v1020 = vunpack.c.l.b16 %v747
    %v1021 = vunpack.c.h.b16 %v747
    %v1022 = vunpack.c.l.b16 %v748
    %v1023 = vunpack.c.h.b16 %v748
    %v1024 = vunpack.c.l.b16 %v749
    %v1025 = vunpack.c.h.b16 %v749
    %v1026 = vunpack.c.l.b16 %v750
    %v1027 = vunpack.c.h.b16 %v750
    %v1028 = vunpack.c.l.b16 %v751
    %v1029 = vunpack.c.h.b16 %v751
    %v1030 = vunpack.c.l.b16 %v752
    %v1031 = vunpack.c.h.b16 %v752
    %v1032 = vunpack.c.l.b16 %v753
    %v1033 = vunpack.c.h.b16 %v753
    %v1034 = vunpack.c.l.b16 %v754
    %v1035 = vunpack.c.h.b16 %v754
    %v1036 = vunpack.c.l.b16 %v755
    %v1037 = vunpack.c.h.b16 %v755
    %v1038 = vunpack.c.l.b16 %v756
    %v1039 = vunpack.c.h.b16 %v756
    %v1040 = vunpack.c.l.b16 %v757
    %v1041 = vunpack.c.h.b16 %v757
    %v1042 = vunpack.c.l.b16 %v758
    %v1043 = vunpack.c.h.b16 %v758
    %v1044 = vunpack.c.l.b16 %v759
    %v1045 = vunpack.c.h.b16 %v759
    %v1046 = vunpack.c.l.b16 %v760
    %v1047 = vunpack.c.h.b16 %v760
    %v1048 = vunpack.c.l.b16 %v761
    %v1049 = vunpack.c.h.b16 %v761
    %v1050 = vunpack.c.l.b16 %v762
    %v1051 = vunpack.c.h.b16 %v762
    %v1052 = vunpack.c.l.b16 %v763
    %v1053 = vunpack.c.h.b16 %v763
    %v1054 = vunpack.c.l.b16 %v764
    %v1055 = vunpack.c.h.b16 %v764
    %v1056 = vunpack.c.l.b16 %v765
    %v1057 = vunpack.c.h.b16 %v765
    %v1058 = vunpack.c.l.b16 %v766
    %v1059 = vunpack.c.h.b16 %v766
    %v1060 = vunpack.c.l.b16 %v767
    %v1061 = vunpack.c.h.b16 %v767
    %v1062 = vunpack.c.l.b16 %v768
    %v1063 = vunpack.c.h.b16 %v768
    %v1064 = vunpack.c.l.b16 %v769
    %v1065 = vunpack.c.h.b16 %v769
    %v1066 = vunpack.c.l.b16 %v770
    %v1067 = vunpack.c.h.b16 %v770
    %v1068 = vunpack.c.l.b16 %v771
    %v1069 = vunpack.c.h.b16 %v771
    %v1070 = vunpack.c.l.b16 %v772
    %v1071 = vunpack.c.h.b16 %v772
    %v1072 = vunpack.c.l.b16 %v773
    %v1073 = vunpack.c.h.b16 %v773
    %v1074 = vunpack.c.l.b16 %v774
    %v1075 = vunpack.c.h.b16 %v774
    %v1076 = vunpack.c.l.b16 %v775
    %v1077 = vunpack.c.h.b16 %v775
    %v1078 = vunpack.c.l.b16 %v776
    %v1079 = vunpack.c.h.b16 %v776
    %v1080 = vunpack.c.l.b16 %v777
    %v1081 = vunpack.c.h.b16 %v777
    %v1082 = vunpack.c.l.b16 %v778
    %v1083 = vunpack.c.h.b16 %v778
    %v1084 = vunpack.c.l.b16 %v779
    %v1085 = vunpack.c.h.b16 %v779
    %v1086 = vunpack.c.l.b16 %v780
    %v1087 = vunpack.c.h.b16 %v780
    %v1088 = vunpack.c.l.b16 %v781
    %v1089 = vunpack.c.h.b16 %v781
    %v1090 = vunpack.c.l.b16 %v782
    %v1091 = vunpack.c.h.b16 %v782
    %v1092 = vunpack.c.l.b16 %v783
    %v1093 = vunpack.c.h.b16 %v783
    %v1094 = vunpack.c.l.b16 %v784
    %v1095 = vunpack.c.h.b16 %v784
    %v1096 = vunpack.c.l.b16 %v785
    %v1097 = vunpack.c.h.b16 %v785
    %v1098 = vunpack.c.l.b16 %v786
    %v1099 = vunpack.c.h.b16 %v786
    %v1100 = vunpack.c.l.b16 %v787
    %v1101 = vunpack.c.h.b16 %v787
    %v1102 = vunpack.c.l.b16 %v788
    %v1103 = vunpack.c.h.b16 %v788
    %v1104 = vunpack.c.l.b16 %v789
    %v1105 = vunpack.c.h.b16 %v789
    %v1106 = vunpack.c.l.b16 %v790
    %v1107 = vunpack.c.h.b16 %v790
    %v1108 = vunpack.c.l.b16 %v791
    %v1109 = vunpack.c.h.b16 %v791
    %v1110 = vunpack.c.l.b16 %v792
    %v1111 = vunpack.c.h.b16 %v792
    %v1112 = vunpack.c.l.b16 %v793
    %v1113 = vunpack.c.h.b16 %v793
    %v1114 = vunpack.c.l.b16 %v794
    %v1115 = vunpack.c.h.b16 %v794
    %v1116 = vunpack.c.l.b16 %v795
    %v1117 = vunpack.c.h.b16 %v795
    %v1118 = vunpack.c.l.b16 %v796
    %v1119 = vunpack.c.h.b16 %v796
    %v1120 = vunpack.c.l.b16 %v797
    %v1121 = vunpack.c.h.b16 %v797
    %v1122 = vunpack.c.l.b16 %v798
    %v1123 = vunpack.c.h.b16 %v798
    %v1124 = vunpack.c.l.b16 %v799
    %v1125 = vunpack.c.h.b16 %v799
    %v1126 = vunpack.c.l.b16 %v800
    %v1127 = vunpack.c.h.b16 %v800
    %v1128 = vunpack.c.l.b16 %v801
    %v1129 = vunpack.c.h.b16 %v801
    %v1130 = vunpack.c.l.b16 %v802
    %v1131 = vunpack.c.h.b16 %v802
    %v1132 = vunpack.c.l.b16 %v803
    %v1133 = vunpack.c.h.b16 %v803
    %v1134 = vunpack.c.l.b16 %v804
    %v1135 = vunpack.c.h.b16 %v804
    %v1136 = vunpack.c.l.b16 %v805
    %v1137 = vunpack.c.h.b16 %v805
    %v1138 = vunpack.c.l.b16 %v806
    %v1139 = vunpack.c.h.b16 %v806
    %v1140 = vunpack.c.l.b16 %v807
    %v1141 = vunpack.c.h.b16 %v807
    %v1142 = vunpack.c.l.b16 %v808
    %v1143 = vunpack.c.h.b16 %v808
    %v1144 = vunpack.c.l.b16 %v809
    %v1145 = vunpack.c.h.b16 %v809
    %v1146 = vunpack.c.l.b16 %v810
    %v1147 = vunpack.c.h.b16 %v810
    %v1148 = vunpack.c.l.b16 %v811
    %v1149 = vunpack.c.h.b16 %v811
    %v1150 = vunpack.c.l.b16 %v812
    %v1151 = vunpack.c.h.b16 %v812
    %v1152 = vunpack.c.l.b16 %v813
    %v1153 = vunpack.c.h.b16 %v813
    %v1154 = vunpack.c.l.b16 %v814
    %v1155 = vunpack.c.h.b16 %v814
    %v1156 = vunpack.c.l.b16 %v815
    %v1157 = vunpack.c.h.b16 %v815
    %v1158 = vunpack.c.l.b16 %v816
    %v1159 = vunpack.c.h.b16 %v816
    %v1160 = vunpack.c.l.b16 %v817
    %v1161 = vunpack.c.h.b16 %v817
    %v1162 = vunpack.c.l.b16 %v818
    %v1163 = vunpack.c.h.b16 %v818
    %v1164 = vunpack.c.l.b16 %v819
    %v1165 = vunpack.c.h.b16 %v819
    %v1166 = vunpack.c.l.b16 %v820
    %v1167 = vunpack.c.h.b16 %v820
    %v1168 = vunpack.c.l.b16 %v821
    %v1169 = vunpack.c.h.b16 %v821
    %v1170 = vunpack.c.l.b16 %v822
    %v1171 = vunpack.c.h.b16 %v822
    %v1172 = vunpack.c.l.b16 %v823
    %v1173 = vunpack.c.h.b16 %v823
    %v1174 = vunpack.c.l.b16 %v824
    %v1175 = vunpack.c.h.b16 %v824
    %v1176 = vunpack.c.l.b16 %v825
    %v1177 = vunpack.c.h.b16 %v825
    %v1178 = vunpack.c.l.b16 %v826
    %v1179 = vunpack.c.h.b16 %v826
    %v1180 = vunpack.c.l.b16 %v827
    %v1181 = vunpack.c.h.b16 %v827
    %v1182 = vunpack.c.l.b16 %v828
    %v1183 = vunpack.c.h.b16 %v828
    %v1184 = vunpack.c.l.b16 %v829
    %v1185 = vunpack.c.h.b16 %v829
    %v1186 = vunpack.c.l.b16 %v830
    %v1187 = vunpack.c.h.b16 %v830
    %v1188 = vunpack.c.l.b16 %v831
    %v1189 = vunpack.c.h.b16 %v831
    %v1190 = vunpack.c.l.b16 %v832
    %v1191 = vunpack.c.h.b16 %v832
    %v1192 = vunpack.c.l.b16 %v833
    %v1193 = vunpack.c.h.b16 %v833
    %v1194 = vunpack.c.l.b16 %v834
    %v1195 = vunpack.c.h.b16 %v834
    %v1196 = vunpack.c.l.b16 %v835
    %v1197 = vunpack.c.h.b16 %v835
    %v1198 = vunpack.c.l.b16 %v836
    %v1199 = vunpack.c.h.b16 %v836
    %v1200 = vunpack.c.l.b16 %v837
    %v1201 = vunpack.c.h.b16 %v837
    %v1202 = vunpack.c.l.b16 %v838
    %v1203 = vunpack.c.h.b16 %v838
    %v1204 = vunpack.c.l.b16 %v839
    %v1205 = vunpack.c.h.b16 %v839
    %v1206 = vunpack.c.l.b16 %v840
    %v1207 = vunpack.c.h.b16 %v840
    %v1208 = vunpack.c.l.b16 %v841
    %v1209 = vunpack.c.h.b16 %v841
    %v1210 = vunpack.c.l.b16 %v842
    %v1211 = vunpack.c.h.b16 %v842
    %v1212 = vunpack.c.l.b16 %v843
    %v1213 = vunpack.c.h.b16 %v843
    %v1214 = vunpack.c.l.b16 %v844
    %v1215 = vunpack.c.h.b16 %v844
    %v1216 = vunpack.c.l.b16 %v845
    %v1217 = vunpack.c.h.b16 %v845
    %v1218 = vunpack.c.l.b16 %v846
    %v1219 = vunpack.c.h.b16 %v846
    %v1220 = vunpack.c.l.b16 %v847
    %v1221 = vunpack.c.h.b16 %v847
    %v1222 = vunpack.c.l.b16 %v848
    %v1223 = vunpack.c.h.b16 %v848
    %v1224 = vunpack.c.l.b16 %v849
    %v1225 = vunpack.c.h.b16 %v849
    %v1226 = vunpack.c.l.b16 %v850
    %v1227 = vunpack.c.h.b16 %v850
    %v1228 = vunpack.c.l.b16 %v851
    %v1229 = vunpack.c.h.b16 %v851
    %v1230 = vunpack.c.l.b16 %v852
    %v1231 = vunpack.c.h.b16 %v852
    %v1232 = vunpack.c.l.b16 %v853
    %v1233 = vunpack.c.h.b16 %v853
    %v1234 = vunpack.c.l.b16 %v854
    %v1235 = vunpack.c.h.b16 %v854
    %v1236 = vunpack.c.l.b16 %v855
    %v1237 = vunpack.c.h.b16 %v855
    %v1238 = vunpack.c.l.b16 %v856
    %v1239 = vunpack.c.h.b16 %v856
    %v1240 = vunpack.c.l.b16 %v857
    %v1241 = vunpack.c.h.b16 %v857
    %v1242 = vunpack.c.l.b16 %v858
    %v1243 = vunpack.c.h.b16 %v858
    %v1244 = vunpack.c.l.b16 %v859
    %v1245 = vunpack.c.h.b16 %v859
    %v1246 = vunpack.c.l.b16 %v860
    %v1247 = vunpack.c.h.b16 %v860
    %v1248 = vunpack.c.l.b16 %v861
    %v1249 = vunpack.c.h.b16 %v861
    %v1250 = vunpack.c.l.b16 %v862
    %v1251 = vunpack.c.h.b16 %v862
    %v1252 = vunpack.c.l.b16 %v863
    %v1253 = vunpack.c.h.b16 %v863
    %v1254 = vunpack.c.l.b16 %v864
    %v1255 = vunpack.c.h.b16 %v864
    %v1256 = vunpack.c.l.b16 %v865
    %v1257 = vunpack.c.h.b16 %v865
    %v1258 = vunpack.c.l.b16 %v866
    %v1259 = vunpack.c.h.b16 %v866
    %v1260 = vunpack.c.l.b16 %v867
    %v1261 = vunpack.c.h.b16 %v867
    %v1262 = vunpack.c.l.b16 %v868
    %v1263 = vunpack.c.h.b16 %v868
    %v1264 = vpack.c.b16 %v1012, %v1008
    %v1265 = vpack.c.b16 %v1013, %v1009
    %v1266 = vpack.c.b16 %v1014, %v1010
    %v1267 = vpack.c.b16 %v1015, %v1011
    %v1268 = vpack.c.b16 %v1020, %v1016
    %v1269 = vpack.c.b16 %v1021, %v1017
    %v1270 = vpack.c.b16 %v1022, %v1018
    %v1271 = vpack.c.b16 %v1023, %v1019
    %v1272 = vpack.c.b16 %v1028, %v1024
    %v1273 = vpack.c.b16 %v1029, %v1025
    %v1274 = vpack.c.b16 %v1030, %v1026
    %v1275 = vpack.c.b16 %v1031, %v1027
    %v1276 = vpack.c.b16 %v1036, %v1032
    %v1277 = vpack.c.b16 %v1037, %v1033
    %v1278 = vpack.c.b16 %v1038, %v1034
    %v1279 = vpack.c.b16 %v1039, %v1035
    %v1280 = vpack.c.b16 %v1044, %v1040
    %v1281 = vpack.c.b16 %v1045, %v1041
    %v1282 = vpack.c.b16 %v1046, %v1042
    %v1283 = vpack.c.b16 %v1047, %v1043
    %v1284 = vpack.c.b16 %v1052, %v1048
    %v1285 = vpack.c.b16 %v1053, %v1049
    %v1286 = vpack.c.b16 %v1054, %v1050
    %v1287 = vpack.c.b16 %v1055, %v1051
    %v1288 = vpack.c.b16 %v1060, %v1056
    %v1289 = vpack.c.b16 %v1061, %v1057
    %v1290 = vpack.c.b16 %v1062, %v1058
    %v1291 = vpack.c.b16 %v1063, %v1059
    %v1292 = vpack.c.b16 %v1068, %v1064
    %v1293 = vpack.c.b16 %v1069, %v1065
    %v1294 = vpack.c.b16 %v1070, %v1066
    %v1295 = vpack.c.b16 %v1071, %v1067
    %v1296 = vpack.c.b16 %v1076, %v1072
    %v1297 = vpack.c.b16 %v1077, %v1073
    %v1298 = vpack.c.b16 %v1078, %v1074
    %v1299 = vpack.c.b16 %v1079, %v1075
    %v1300 = vpack.c.b16 %v1084, %v1080
    %v1301 = vpack.c.b16 %v1085, %v1081
    %v1302 = vpack.c.b16 %v1086, %v1082
    %v1303 = vpack.c.b16 %v1087, %v1083
    %v1304 = vpack.c.b16 %v1092, %v1088
    %v1305 = vpack.c.b16 %v1093, %v1089
    %v1306 = vpack.c.b16 %v1094, %v1090
    %v1307 = vpack.c.b16 %v1095, %v1091
    %v1308 = vpack.c.b16 %v1100, %v1096
    %v1309 = vpack.c.b16 %v1101, %v1097
    %v1310 = vpack.c.b16 %v1102, %v1098
    %v1311 = vpack.c.b16 %v1103, %v1099
    %v1312 = vpack.c.b16 %v1108, %v1104
    %v1313 = vpack.c.b16 %v1109, %v1105
    %v1314 = vpack.c.b16 %v1110, %v1106
    %v1315 = vpack.c.b16 %v1111, %v1107
    %v1316 = vpack.c.b16 %v1116, %v1112
    %v1317 = vpack.c.b16 %v1117, %v1113
    %v1318 = vpack.c.b16 %v1118, %v1114
    %v1319 = vpack.c.b16 %v1119, %v1115
    %v1320 = vpack.c.b16 %v1124, %v1120
    %v1321 = vpack.c.b16 %v1125, %v1121
    %v1322 = vpack.c.b16 %v1126, %v1122
    %v1323 = vpack.c.b16 %v1127, %v1123
    %v1324 = vpack.c.b16 %v1132, %v1128
    %v1325 = vpack.c.b16 %v1133, %v1129
    %v1326 = vpack.c.b16 %v1134, %v1130
    %v1327 = vpack.c.b16 %v1135, %v1131
    %v1328 = vpack.c.b16 %v1140, %v1136
    %v1329 = vpack.c.b16 %v1141, %v1137
    %v1330 = vpack.c.b16 %v1142, %v1138
    %v1331 = vpack.c.b16 %v1143, %v1139
    %v1332 = vpack.c.b16 %v1148, %v1144
    %v1333 = vpack.c.b16 %v1149, %v1145
    %v1334 = vpack.c.b16 %v1150, %v1146
    %v1335 = vpack.c.b16 %v1151, %v1147
    %v1336 = vpack.c.b16 %v1156, %v1152
    %v1337 = vpack.c.b16 %v1157, %v1153
    %v1338 = vpack.c.b16 %v1158, %v1154
    %v1339 = vpack.c.b16 %v1159, %v1155
    %v1340 = vpack.c.b16 %v1164, %v1160
    %v1341 = vpack.c.b16 %v1165, %v1161
    %v1342 = vpack.c.b16 %v1166, %v1162
    %v1343 = vpack.c.b16 %v1167, %v1163
    %v1344 = vpack.c.b16 %v1172, %v1168
    %v1345 = vpack.c.b16 %v1173, %v1169
    %v1346 = vpack.c.b16 %v1174, %v1170
    %v1347 = vpack.c.b16 %v1175, %v1171
    %v1348 = vpack.c.b16 %v1180, %v1176
    %v1349 = vpack.c.b16 %v1181, %v1177
    %v1350 = vpack.c.b16 %v1182, %v1178
    %v1351 = vpack.c.b16 %v1183, %v1179
    %v1352 = vpack.c.b16 %v1188, %v1184
    %v1353 = vpack.c.b16 %v1189, %v1185
    %v1354 = vpack.c.b16 %v1190, %v1186
    %v1355 = vpack.c.b16 %v1191, %v1187
    %v1356 = vpack.c.b16 %v1196, %v1192
    %v1357 = vpack.c.b16 %v1197, %v1193
    %v1358 = vpack.c.b16 %v1198, %v1194
    %v1359 = vpack.c.b16 %v1199, %v1195
    %v1360 = vpack.c.b16 %v1204, %v1200
    %v1361 = vpack.c.b16 %v1205, %v1201
    %v1362 = vpack.c.b16 %v1206, %v1202
    %v1363 = vpack.c.b16 %v1207, %v1203
    %v1364 = vpack.c.b16 %v1212, %v1208
    %v1365 = vpack.c.b16 %v1213, %v1209
    %v1366 = vpack.c.b16 %v1214, %v1210
    %v1367 = vpack.c.b16 %v1215, %v1211
    %v1368 = vpack.c.b16 %v1220, %v1216
    %v1369 = vpack.c.b16 %v1221, %v1217
    %v1370 = vpack.c.b16 %v1222, %v1218
    %v1371 = vpack.c.b16 %v1223, %v1219
    %v1372 = vpack.c.b16 %v1228, %v1224
    %v1373 = vpack.c.b16 %v1229, %v1225
    %v1374 = vpack.c.b16 %v1230, %v1226
    %v1375 = vpack.c.b16 %v1231, %v1227
    %v1376 = vpack.c.b16 %v1236, %v1232
    %v1377 = vpack.c.b16 %v1237, %v1233
    %v1378 = vpack.c.b16 %v1238, %v1234
    %v1379 = vpack.c.b16 %v1239, %v1235
    %v1380 = vpack.c.b16 %v1244, %v1240
    %v1381 = vpack.c.b16 %v1245, %v1241
    %v1382 = vpack.c.b16 %v1246, %v1242
    %v1383 = vpack.c.b16 %v1247, %v1243
    %v1384 = vpack.c.b16 %v1252, %v1248
    %v1385 = vpack.c.b16 %v1253, %v1249
    %v1386 = vpack.c.b16 %v1254, %v1250
    %v1387 = vpack.c.b16 %v1255, %v1251
    %v1388 = vpack.c.b16 %v1260, %v1256
    %v1389 = vpack.c.b16 %v1261, %v1257
    %v1390 = vpack.c.b16 %v1262, %v1258
    %v1391 = vpack.c.b16 %v1263, %v1259
    %1520 = vmatpush.bf16.msra.mxu0 %v1292
    %1521 = vmatpush.bf16.msra.mxu0 %v1288
    %1522 = vmatpush.bf16.msra.mxu0 %v1284
    %1523 = vmatpush.bf16.msra.mxu0 %v1280
    %1524 = vmatpush.bf16.msra.mxu0 %v1276
    %1525 = vmatpush.bf16.msra.mxu0 %v1272
    %1526 = vmatpush.bf16.msra.mxu0 %v1268
    %1527 = vmatpush.bf16.msra.mxu0 %v1264
    %1528 = vmatmul.bf16.gmra.mxu0 %v737
    %v1529 = vpop.f32.mrf.mxu0
    %v1530 = vadd.f32 %v872, %v1529
    %v1531 = vpop.f32.mrf.mxu0
    %1532 = vdwg.mxu0
    %1533 = vmatpush.bf16.msra.mxu0 %v1324
    %1534 = vmatpush.bf16.msra.mxu0 %v1320
    %1535 = vmatpush.bf16.msra.mxu0 %v1316
    %1536 = vmatpush.bf16.msra.mxu0 %v1312
    %1537 = vmatpush.bf16.msra.mxu0 %v1308
    %1538 = vmatpush.bf16.msra.mxu0 %v1304
    %1539 = vmatpush.bf16.msra.mxu0 %v1300
    %1540 = vmatpush.bf16.msra.mxu0 %v1296
    %1541 = vmatmul.bf16.gmra.mxu0 %v738
    %v1542 = vpop.f32.mrf.mxu0
    %v1543 = vadd.f32 %v1530, %v1542
    %v1544 = vpop.f32.mrf.mxu0
    %1545 = vdwg.mxu0
    %1546 = vmatpush.bf16.msra.mxu0 %v1356
    %1547 = vmatpush.bf16.msra.mxu0 %v1352
    %1548 = vmatpush.bf16.msra.mxu0 %v1348
    %1549 = vmatpush.bf16.msra.mxu0 %v1344
    %1550 = vmatpush.bf16.msra.mxu0 %v1340
    %1551 = vmatpush.bf16.msra.mxu0 %v1336
    %1552 = vmatpush.bf16.msra.mxu0 %v1332
    %1553 = vmatpush.bf16.msra.mxu0 %v1328
    %1554 = vmatmul.bf16.gmra.mxu0 %v739
    %v1555 = vpop.f32.mrf.mxu0
    %v1556 = vadd.f32 %v1543, %v1555
    %v1557 = vpop.f32.mrf.mxu0
    %1558 = vdwg.mxu0
    %1559 = vmatpush.bf16.msra.mxu0 %v1388
    %1560 = vmatpush.bf16.msra.mxu0 %v1384
    %1561 = vmatpush.bf16.msra.mxu0 %v1380
    %1562 = vmatpush.bf16.msra.mxu0 %v1376
    %1563 = vmatpush.bf16.msra.mxu0 %v1372
    %1564 = vmatpush.bf16.msra.mxu0 %v1368
    %1565 = vmatpush.bf16.msra.mxu0 %v1364
    %1566 = vmatpush.bf16.msra.mxu0 %v1360
    %1567 = vmatmul.bf16.gmra.mxu0 %v740
    %v1568 = vpop.f32.mrf.mxu0
    %v1569 = vadd.f32 %v1556, %v1568
    %v1570 = vpop.f32.mrf.mxu0
    %1571 = vdwg.mxu0
    %1572 = vmatpush.bf16.msra.mxu0 %v1293
    %1573 = vmatpush.bf16.msra.mxu0 %v1289
    %1574 = vmatpush.bf16.msra.mxu0 %v1285
    %1575 = vmatpush.bf16.msra.mxu0 %v1281
    %1576 = vmatpush.bf16.msra.mxu0 %v1277
    %1577 = vmatpush.bf16.msra.mxu0 %v1273
    %1578 = vmatpush.bf16.msra.mxu0 %v1269
    %1579 = vmatpush.bf16.msra.mxu0 %v1265
    %1580 = vmatmul.bf16.gmra.mxu0 %v737
    %v1581 = vpop.f32.mrf.mxu0
    %v1582 = vadd.f32 %v873, %v1581
    %v1583 = vpop.f32.mrf.mxu0
    %1584 = vdwg.mxu0
    %1585 = vmatpush.bf16.msra.mxu0 %v1325
    %1586 = vmatpush.bf16.msra.mxu0 %v1321
    %1587 = vmatpush.bf16.msra.mxu0 %v1317
    %1588 = vmatpush.bf16.msra.mxu0 %v1313
    %1589 = vmatpush.bf16.msra.mxu0 %v1309
    %1590 = vmatpush.bf16.msra.mxu0 %v1305
    %1591 = vmatpush.bf16.msra.mxu0 %v1301
    %1592 = vmatpush.bf16.msra.mxu0 %v1297
    %1593 = vmatmul.bf16.gmra.mxu0 %v738
    %v1594 = vpop.f32.mrf.mxu0
    %v1595 = vadd.f32 %v1582, %v1594
    %v1596 = vpop.f32.mrf.mxu0
    %1597 = vdwg.mxu0
    %1598 = vmatpush.bf16.msra.mxu0 %v1357
    %1599 = vmatpush.bf16.msra.mxu0 %v1353
    %1600 = vmatpush.bf16.msra.mxu0 %v1349
    %1601 = vmatpush.bf16.msra.mxu0 %v1345
    %1602 = vmatpush.bf16.msra.mxu0 %v1341
    %1603 = vmatpush.bf16.msra.mxu0 %v1337
    %1604 = vmatpush.bf16.msra.mxu0 %v1333
    %1605 = vmatpush.bf16.msra.mxu0 %v1329
    %1606 = vmatmul.bf16.gmra.mxu0 %v739
    %v1607 = vpop.f32.mrf.mxu0
    %v1608 = vadd.f32 %v1595, %v1607
    %v1609 = vpop.f32.mrf.mxu0
    %1610 = vdwg.mxu0
    %1611 = vmatpush.bf16.msra.mxu0 %v1389
    %1612 = vmatpush.bf16.msra.mxu0 %v1385
    %1613 = vmatpush.bf16.msra.mxu0 %v1381
    %1614 = vmatpush.bf16.msra.mxu0 %v1377
    %1615 = vmatpush.bf16.msra.mxu0 %v1373
    %1616 = vmatpush.bf16.msra.mxu0 %v1369
    %1617 = vmatpush.bf16.msra.mxu0 %v1365
    %1618 = vmatpush.bf16.msra.mxu0 %v1361
    %1619 = vmatmul.bf16.gmra.mxu0 %v740
    %v1620 = vpop.f32.mrf.mxu0
    %v1621 = vadd.f32 %v1608, %v1620
    %v1622 = vpop.f32.mrf.mxu0
    %1623 = vdwg.mxu0
    %1624 = vmatpush.bf16.msra.mxu0 %v1294
    %1625 = vmatpush.bf16.msra.mxu0 %v1290
    %1626 = vmatpush.bf16.msra.mxu0 %v1286
    %1627 = vmatpush.bf16.msra.mxu0 %v1282
    %1628 = vmatpush.bf16.msra.mxu0 %v1278
    %1629 = vmatpush.bf16.msra.mxu0 %v1274
    %1630 = vmatpush.bf16.msra.mxu0 %v1270
    %1631 = vmatpush.bf16.msra.mxu0 %v1266
    %1632 = vmatmul.bf16.gmra.mxu0 %v737
    %v1633 = vpop.f32.mrf.mxu0
    %v1634 = vadd.f32 %v874, %v1633
    %v1635 = vpop.f32.mrf.mxu0
    %1636 = vdwg.mxu0
    %1637 = vmatpush.bf16.msra.mxu0 %v1326
    %1638 = vmatpush.bf16.msra.mxu0 %v1322
    %1639 = vmatpush.bf16.msra.mxu0 %v1318
    %1640 = vmatpush.bf16.msra.mxu0 %v1314
    %1641 = vmatpush.bf16.msra.mxu0 %v1310
    %1642 = vmatpush.bf16.msra.mxu0 %v1306
    %1643 = vmatpush.bf16.msra.mxu0 %v1302
    %1644 = vmatpush.bf16.msra.mxu0 %v1298
    %1645 = vmatmul.bf16.gmra.mxu0 %v738
    %v1646 = vpop.f32.mrf.mxu0
    %v1647 = vadd.f32 %v1634, %v1646
    %v1648 = vpop.f32.mrf.mxu0
    %1649 = vdwg.mxu0
    %1650 = vmatpush.bf16.msra.mxu0 %v1358
    %1651 = vmatpush.bf16.msra.mxu0 %v1354
    %1652 = vmatpush.bf16.msra.mxu0 %v1350
    %1653 = vmatpush.bf16.msra.mxu0 %v1346
    %1654 = vmatpush.bf16.msra.mxu0 %v1342
    %1655 = vmatpush.bf16.msra.mxu0 %v1338
    %1656 = vmatpush.bf16.msra.mxu0 %v1334
    %1657 = vmatpush.bf16.msra.mxu0 %v1330
    %1658 = vmatmul.bf16.gmra.mxu0 %v739
    %v1659 = vpop.f32.mrf.mxu0
    %v1660 = vadd.f32 %v1647, %v1659
    %v1661 = vpop.f32.mrf.mxu0
    %1662 = vdwg.mxu0
    %1663 = vmatpush.bf16.msra.mxu0 %v1390
    %1664 = vmatpush.bf16.msra.mxu0 %v1386
    %1665 = vmatpush.bf16.msra.mxu0 %v1382
    %1666 = vmatpush.bf16.msra.mxu0 %v1378
    %1667 = vmatpush.bf16.msra.mxu0 %v1374
    %1668 = vmatpush.bf16.msra.mxu0 %v1370
    %1669 = vmatpush.bf16.msra.mxu0 %v1366
    %1670 = vmatpush.bf16.msra.mxu0 %v1362
    %1671 = vmatmul.bf16.gmra.mxu0 %v740
    %v1672 = vpop.f32.mrf.mxu0
    %v1673 = vadd.f32 %v1660, %v1672
    %v1674 = vpop.f32.mrf.mxu0
    %1675 = vdwg.mxu0
    %1676 = vmatpush.bf16.msra.mxu0 %v1295
    %1677 = vmatpush.bf16.msra.mxu0 %v1291
    %1678 = vmatpush.bf16.msra.mxu0 %v1287
    %1679 = vmatpush.bf16.msra.mxu0 %v1283
    %1680 = vmatpush.bf16.msra.mxu0 %v1279
    %1681 = vmatpush.bf16.msra.mxu0 %v1275
    %1682 = vmatpush.bf16.msra.mxu0 %v1271
    %1683 = vmatpush.bf16.msra.mxu0 %v1267
    %1684 = vmatmul.bf16.gmra.mxu0 %v737
    %v1685 = vpop.f32.mrf.mxu0
    %v1686 = vadd.f32 %v875, %v1685
    %v1687 = vpop.f32.mrf.mxu0
    %1688 = vdwg.mxu0
    %1689 = vmatpush.bf16.msra.mxu0 %v1327
    %1690 = vmatpush.bf16.msra.mxu0 %v1323
    %1691 = vmatpush.bf16.msra.mxu0 %v1319
    %1692 = vmatpush.bf16.msra.mxu0 %v1315
    %1693 = vmatpush.bf16.msra.mxu0 %v1311
    %1694 = vmatpush.bf16.msra.mxu0 %v1307
    %1695 = vmatpush.bf16.msra.mxu0 %v1303
    %1696 = vmatpush.bf16.msra.mxu0 %v1299
    %1697 = vmatmul.bf16.gmra.mxu0 %v738
    %v1698 = vpop.f32.mrf.mxu0
    %v1699 = vadd.f32 %v1686, %v1698
    %v1700 = vpop.f32.mrf.mxu0
    %1701 = vdwg.mxu0
    %1702 = vmatpush.bf16.msra.mxu0 %v1359
    %1703 = vmatpush.bf16.msra.mxu0 %v1355
    %1704 = vmatpush.bf16.msra.mxu0 %v1351
    %1705 = vmatpush.bf16.msra.mxu0 %v1347
    %1706 = vmatpush.bf16.msra.mxu0 %v1343
    %1707 = vmatpush.bf16.msra.mxu0 %v1339
    %1708 = vmatpush.bf16.msra.mxu0 %v1335
    %1709 = vmatpush.bf16.msra.mxu0 %v1331
    %1710 = vmatmul.bf16.gmra.mxu0 %v739
    %v1711 = vpop.f32.mrf.mxu0
    %v1712 = vadd.f32 %v1699, %v1711
    %v1713 = vpop.f32.mrf.mxu0
    %1714 = vdwg.mxu0
    %1715 = vmatpush.bf16.msra.mxu0 %v1391
    %1716 = vmatpush.bf16.msra.mxu0 %v1387
    %1717 = vmatpush.bf16.msra.mxu0 %v1383
    %1718 = vmatpush.bf16.msra.mxu0 %v1379
    %1719 = vmatpush.bf16.msra.mxu0 %v1375
    %1720 = vmatpush.bf16.msra.mxu0 %v1371
    %1721 = vmatpush.bf16.msra.mxu0 %v1367
    %1722 = vmatpush.bf16.msra.mxu0 %v1363
    %1723 = vmatmul.bf16.gmra.mxu0 %v740
    %v1724 = vpop.f32.mrf.mxu0
    %v1725 = vadd.f32 %v1712, %v1724
    %v1726 = vpop.f32.mrf.mxu0
    %1727 = vdwg.mxu0
    %v1728 = vmax.f32 %v1569, 0.0
    %v1729 = vmax.f32 %v1621, 0.0
    %v1730 = vmax.f32 %v1673, 0.0
    %v1731 = vmax.f32 %v1725, 0.0
    %v1732 = vpack.c.bf16 %v1728, %v1728
    %v1733 = vpack.c.bf16 %v1729, %v1729
    %v1734 = vpack.c.bf16 %v1730, %v1730
    %v1735 = vpack.c.bf16 %v1731, %v1731
    %v1736 = vld [vmem:[#allocation2 + $0x780] sm:$0xff]
    %v1737 = vld [vmem:[#allocation2 + $0x788] sm:$0xff]
    %v1738 = vld [vmem:[#allocation2 + $0x790] sm:$0xff]
    %v1739 = vld [vmem:[#allocation2 + $0x798] sm:$0xff]
    %v1740 = vld [vmem:[#allocation2 + $0x7a0] sm:$0xff]
    %v1741 = vld [vmem:[#allocation2 + $0x7a8] sm:$0xff]
    %v1742 = vld [vmem:[#allocation2 + $0x7b0] sm:$0xff]
    %v1743 = vld [vmem:[#allocation2 + $0x7b8] sm:$0xff]
    %v1744 = vld [vmem:[#allocation2 + $0x7c0] sm:$0xff]
    %v1745 = vld [vmem:[#allocation2 + $0x7c8] sm:$0xff]
    %v1746 = vld [vmem:[#allocation2 + $0x7d0] sm:$0xff]
    %v1747 = vld [vmem:[#allocation2 + $0x7d8] sm:$0xff]
    %v1748 = vld [vmem:[#allocation2 + $0x7e0] sm:$0xff]
    %v1749 = vld [vmem:[#allocation2 + $0x7e8] sm:$0xff]
    %v1750 = vld [vmem:[#allocation2 + $0x7f0] sm:$0xff]
    %v1751 = vld [vmem:[#allocation2 + $0x7f8] sm:$0xff]
    %v1752 = vld [vmem:[#allocation2 + $0x800] sm:$0xff]
    %v1753 = vld [vmem:[#allocation2 + $0x808] sm:$0xff]
    %v1754 = vld [vmem:[#allocation2 + $0x810] sm:$0xff]
    %v1755 = vld [vmem:[#allocation2 + $0x818] sm:$0xff]
    %v1756 = vld [vmem:[#allocation2 + $0x820] sm:$0xff]
    %v1757 = vld [vmem:[#allocation2 + $0x828] sm:$0xff]
    %v1758 = vld [vmem:[#allocation2 + $0x830] sm:$0xff]
    %v1759 = vld [vmem:[#allocation2 + $0x838] sm:$0xff]
    %v1760 = vld [vmem:[#allocation2 + $0x840] sm:$0xff]
    %v1761 = vld [vmem:[#allocation2 + $0x848] sm:$0xff]
    %v1762 = vld [vmem:[#allocation2 + $0x850] sm:$0xff]
    %v1763 = vld [vmem:[#allocation2 + $0x858] sm:$0xff]
    %v1764 = vld [vmem:[#allocation2 + $0x860] sm:$0xff]
    %v1765 = vld [vmem:[#allocation2 + $0x868] sm:$0xff]
    %v1766 = vld [vmem:[#allocation2 + $0x870] sm:$0xff]
    %v1767 = vld [vmem:[#allocation2 + $0x878] sm:$0xff]
    %v1768 = vld [vmem:[#allocation2 + $0x880] sm:$0xff]
    %v1769 = vld [vmem:[#allocation2 + $0x888] sm:$0xff]
    %v1770 = vld [vmem:[#allocation2 + $0x890] sm:$0xff]
    %v1771 = vld [vmem:[#allocation2 + $0x898] sm:$0xff]
    %v1772 = vld [vmem:[#allocation2 + $0x8a0] sm:$0xff]
    %v1773 = vld [vmem:[#allocation2 + $0x8a8] sm:$0xff]
    %v1774 = vld [vmem:[#allocation2 + $0x8b0] sm:$0xff]
    %v1775 = vld [vmem:[#allocation2 + $0x8b8] sm:$0xff]
    %v1776 = vld [vmem:[#allocation2 + $0x8c0] sm:$0xff]
    %v1777 = vld [vmem:[#allocation2 + $0x8c8] sm:$0xff]
    %v1778 = vld [vmem:[#allocation2 + $0x8d0] sm:$0xff]
    %v1779 = vld [vmem:[#allocation2 + $0x8d8] sm:$0xff]
    %v1780 = vld [vmem:[#allocation2 + $0x8e0] sm:$0xff]
    %v1781 = vld [vmem:[#allocation2 + $0x8e8] sm:$0xff]
    %v1782 = vld [vmem:[#allocation2 + $0x8f0] sm:$0xff]
    %v1783 = vld [vmem:[#allocation2 + $0x8f8] sm:$0xff]
    %v1784 = vld [vmem:[#allocation2 + $0x900] sm:$0xff]
    %v1785 = vld [vmem:[#allocation2 + $0x908] sm:$0xff]
    %v1786 = vld [vmem:[#allocation2 + $0x910] sm:$0xff]
    %v1787 = vld [vmem:[#allocation2 + $0x918] sm:$0xff]
    %v1788 = vld [vmem:[#allocation2 + $0x920] sm:$0xff]
    %v1789 = vld [vmem:[#allocation2 + $0x928] sm:$0xff]
    %v1790 = vld [vmem:[#allocation2 + $0x930] sm:$0xff]
    %v1791 = vld [vmem:[#allocation2 + $0x938] sm:$0xff]
    %v1792 = vld [vmem:[#allocation2 + $0x940] sm:$0xff]
    %v1793 = vld [vmem:[#allocation2 + $0x948] sm:$0xff]
    %v1794 = vld [vmem:[#allocation2 + $0x950] sm:$0xff]
    %v1795 = vld [vmem:[#allocation2 + $0x958] sm:$0xff]
    %v1796 = vld [vmem:[#allocation2 + $0x960] sm:$0xff]
    %v1797 = vld [vmem:[#allocation2 + $0x968] sm:$0xff]
    %v1798 = vld [vmem:[#allocation2 + $0x970] sm:$0xff]
    %v1799 = vld [vmem:[#allocation2 + $0x978] sm:$0xff]
    %v1800 = vld [vmem:[#allocation2 + $0x980] sm:$0xff]
    %v1801 = vld [vmem:[#allocation2 + $0x988] sm:$0xff]
    %v1802 = vld [vmem:[#allocation2 + $0x990] sm:$0xff]
    %v1803 = vld [vmem:[#allocation2 + $0x998] sm:$0xff]
    %v1804 = vld [vmem:[#allocation2 + $0x9a0] sm:$0xff]
    %v1805 = vld [vmem:[#allocation2 + $0x9a8] sm:$0xff]
    %v1806 = vld [vmem:[#allocation2 + $0x9b0] sm:$0xff]
    %v1807 = vld [vmem:[#allocation2 + $0x9b8] sm:$0xff]
    %v1808 = vld [vmem:[#allocation2 + $0x9c0] sm:$0xff]
    %v1809 = vld [vmem:[#allocation2 + $0x9c8] sm:$0xff]
    %v1810 = vld [vmem:[#allocation2 + $0x9d0] sm:$0xff]
    %v1811 = vld [vmem:[#allocation2 + $0x9d8] sm:$0xff]
    %v1812 = vld [vmem:[#allocation2 + $0x9e0] sm:$0xff]
    %v1813 = vld [vmem:[#allocation2 + $0x9e8] sm:$0xff]
    %v1814 = vld [vmem:[#allocation2 + $0x9f0] sm:$0xff]
    %v1815 = vld [vmem:[#allocation2 + $0x9f8] sm:$0xff]
    %v1816 = vld [vmem:[#allocation2 + $0xa00] sm:$0xff]
    %v1817 = vld [vmem:[#allocation2 + $0xa08] sm:$0xff]
    %v1818 = vld [vmem:[#allocation2 + $0xa10] sm:$0xff]
    %v1819 = vld [vmem:[#allocation2 + $0xa18] sm:$0xff]
    %v1820 = vld [vmem:[#allocation2 + $0xa20] sm:$0xff]
    %v1821 = vld [vmem:[#allocation2 + $0xa28] sm:$0xff]
    %v1822 = vld [vmem:[#allocation2 + $0xa30] sm:$0xff]
    %v1823 = vld [vmem:[#allocation2 + $0xa38] sm:$0xff]
    %v1824 = vld [vmem:[#allocation2 + $0xa40] sm:$0xff]
    %v1825 = vld [vmem:[#allocation2 + $0xa48] sm:$0xff]
    %v1826 = vld [vmem:[#allocation2 + $0xa50] sm:$0xff]
    %v1827 = vld [vmem:[#allocation2 + $0xa58] sm:$0xff]
    %v1828 = vld [vmem:[#allocation2 + $0xa60] sm:$0xff]
    %v1829 = vld [vmem:[#allocation2 + $0xa68] sm:$0xff]
    %v1830 = vld [vmem:[#allocation2 + $0xa70] sm:$0xff]
    %v1831 = vld [vmem:[#allocation2 + $0xa78] sm:$0xff]
    %v1832 = vld [vmem:[#allocation2 + $0xa80] sm:$0xff]
    %v1833 = vld [vmem:[#allocation2 + $0xa88] sm:$0xff]
    %v1834 = vld [vmem:[#allocation2 + $0xa90] sm:$0xff]
    %v1835 = vld [vmem:[#allocation2 + $0xa98] sm:$0xff]
    %v1836 = vld [vmem:[#allocation2 + $0xaa0] sm:$0xff]
    %v1837 = vld [vmem:[#allocation2 + $0xaa8] sm:$0xff]
    %v1838 = vld [vmem:[#allocation2 + $0xab0] sm:$0xff]
    %v1839 = vld [vmem:[#allocation2 + $0xab8] sm:$0xff]
    %v1840 = vld [vmem:[#allocation2 + $0xac0] sm:$0xff]
    %v1841 = vld [vmem:[#allocation2 + $0xac8] sm:$0xff]
    %v1842 = vld [vmem:[#allocation2 + $0xad0] sm:$0xff]
    %v1843 = vld [vmem:[#allocation2 + $0xad8] sm:$0xff]
    %v1844 = vld [vmem:[#allocation2 + $0xae0] sm:$0xff]
    %v1845 = vld [vmem:[#allocation2 + $0xae8] sm:$0xff]
    %v1846 = vld [vmem:[#allocation2 + $0xaf0] sm:$0xff]
    %v1847 = vld [vmem:[#allocation2 + $0xaf8] sm:$0xff]
    %v1848 = vld [vmem:[#allocation2 + $0xb00] sm:$0xff]
    %v1849 = vld [vmem:[#allocation2 + $0xb08] sm:$0xff]
    %v1850 = vld [vmem:[#allocation2 + $0xb10] sm:$0xff]
    %v1851 = vld [vmem:[#allocation2 + $0xb18] sm:$0xff]
    %v1852 = vld [vmem:[#allocation2 + $0xb20] sm:$0xff]
    %v1853 = vld [vmem:[#allocation2 + $0xb28] sm:$0xff]
    %v1854 = vld [vmem:[#allocation2 + $0xb30] sm:$0xff]
    %v1855 = vld [vmem:[#allocation2 + $0xb38] sm:$0xff]
    %v1856 = vld [vmem:[#allocation2 + $0xb40] sm:$0xff]
    %v1857 = vld [vmem:[#allocation2 + $0xb48] sm:$0xff]
    %v1858 = vld [vmem:[#allocation2 + $0xb50] sm:$0xff]
    %v1859 = vld [vmem:[#allocation2 + $0xb58] sm:$0xff]
    %v1860 = vld [vmem:[#allocation2 + $0xb60] sm:$0xff]
    %v1861 = vld [vmem:[#allocation2 + $0xb68] sm:$0xff]
    %v1862 = vld [vmem:[#allocation2 + $0xb70] sm:$0xff]
    %v1863 = vld [vmem:[#allocation2 + $0xb78] sm:$0xff]
    %s1864 = scalar_lea.vmem [#allocation5], 4
    %v1865 = vld [vmem:[%s1864] ss:$8 sm:$0xf]
    %v1867 = vperm.slane %v1865, 0
    %v1868 = vperm.slane %v1865, 1
    %v1869 = vperm.slane %v1865, 2
    %v1870 = vperm.slane %v1865, 3
    %v2003 = vunpack.c.l.b16 %v1736
    %v2004 = vunpack.c.h.b16 %v1736
    %v2005 = vunpack.c.l.b16 %v1737
    %v2006 = vunpack.c.h.b16 %v1737
    %v2007 = vunpack.c.l.b16 %v1738
    %v2008 = vunpack.c.h.b16 %v1738
    %v2009 = vunpack.c.l.b16 %v1739
    %v2010 = vunpack.c.h.b16 %v1739
    %v2011 = vunpack.c.l.b16 %v1740
    %v2012 = vunpack.c.h.b16 %v1740
    %v2013 = vunpack.c.l.b16 %v1741
    %v2014 = vunpack.c.h.b16 %v1741
    %v2015 = vunpack.c.l.b16 %v1742
    %v2016 = vunpack.c.h.b16 %v1742
    %v2017 = vunpack.c.l.b16 %v1743
    %v2018 = vunpack.c.h.b16 %v1743
    %v2019 = vunpack.c.l.b16 %v1744
    %v2020 = vunpack.c.h.b16 %v1744
    %v2021 = vunpack.c.l.b16 %v1745
    %v2022 = vunpack.c.h.b16 %v1745
    %v2023 = vunpack.c.l.b16 %v1746
    %v2024 = vunpack.c.h.b16 %v1746
    %v2025 = vunpack.c.l.b16 %v1747
    %v2026 = vunpack.c.h.b16 %v1747
    %v2027 = vunpack.c.l.b16 %v1748
    %v2028 = vunpack.c.h.b16 %v1748
    %v2029 = vunpack.c.l.b16 %v1749
    %v2030 = vunpack.c.h.b16 %v1749
    %v2031 = vunpack.c.l.b16 %v1750
    %v2032 = vunpack.c.h.b16 %v1750
    %v2033 = vunpack.c.l.b16 %v1751
    %v2034 = vunpack.c.h.b16 %v1751
    %v2035 = vunpack.c.l.b16 %v1752
    %v2036 = vunpack.c.h.b16 %v1752
    %v2037 = vunpack.c.l.b16 %v1753
    %v2038 = vunpack.c.h.b16 %v1753
    %v2039 = vunpack.c.l.b16 %v1754
    %v2040 = vunpack.c.h.b16 %v1754
    %v2041 = vunpack.c.l.b16 %v1755
    %v2042 = vunpack.c.h.b16 %v1755
    %v2043 = vunpack.c.l.b16 %v1756
    %v2044 = vunpack.c.h.b16 %v1756
    %v2045 = vunpack.c.l.b16 %v1757
    %v2046 = vunpack.c.h.b16 %v1757
    %v2047 = vunpack.c.l.b16 %v1758
    %v2048 = vunpack.c.h.b16 %v1758
    %v2049 = vunpack.c.l.b16 %v1759
    %v2050 = vunpack.c.h.b16 %v1759
    %v2051 = vunpack.c.l.b16 %v1760
    %v2052 = vunpack.c.h.b16 %v1760
    %v2053 = vunpack.c.l.b16 %v1761
    %v2054 = vunpack.c.h.b16 %v1761
    %v2055 = vunpack.c.l.b16 %v1762
    %v2056 = vunpack.c.h.b16 %v1762
    %v2057 = vunpack.c.l.b16 %v1763
    %v2058 = vunpack.c.h.b16 %v1763
    %v2059 = vunpack.c.l.b16 %v1764
    %v2060 = vunpack.c.h.b16 %v1764
    %v2061 = vunpack.c.l.b16 %v1765
    %v2062 = vunpack.c.h.b16 %v1765
    %v2063 = vunpack.c.l.b16 %v1766
    %v2064 = vunpack.c.h.b16 %v1766
    %v2065 = vunpack.c.l.b16 %v1767
    %v2066 = vunpack.c.h.b16 %v1767
    %v2067 = vunpack.c.l.b16 %v1768
    %v2068 = vunpack.c.h.b16 %v1768
    %v2069 = vunpack.c.l.b16 %v1769
    %v2070 = vunpack.c.h.b16 %v1769
    %v2071 = vunpack.c.l.b16 %v1770
    %v2072 = vunpack.c.h.b16 %v1770
    %v2073 = vunpack.c.l.b16 %v1771
    %v2074 = vunpack.c.h.b16 %v1771
    %v2075 = vunpack.c.l.b16 %v1772
    %v2076 = vunpack.c.h.b16 %v1772
    %v2077 = vunpack.c.l.b16 %v1773
    %v2078 = vunpack.c.h.b16 %v1773
    %v2079 = vunpack.c.l.b16 %v1774
    %v2080 = vunpack.c.h.b16 %v1774
    %v2081 = vunpack.c.l.b16 %v1775
    %v2082 = vunpack.c.h.b16 %v1775
    %v2083 = vunpack.c.l.b16 %v1776
    %v2084 = vunpack.c.h.b16 %v1776
    %v2085 = vunpack.c.l.b16 %v1777
    %v2086 = vunpack.c.h.b16 %v1777
    %v2087 = vunpack.c.l.b16 %v1778
    %v2088 = vunpack.c.h.b16 %v1778
    %v2089 = vunpack.c.l.b16 %v1779
    %v2090 = vunpack.c.h.b16 %v1779
    %v2091 = vunpack.c.l.b16 %v1780
    %v2092 = vunpack.c.h.b16 %v1780
    %v2093 = vunpack.c.l.b16 %v1781
    %v2094 = vunpack.c.h.b16 %v1781
    %v2095 = vunpack.c.l.b16 %v1782
    %v2096 = vunpack.c.h.b16 %v1782
    %v2097 = vunpack.c.l.b16 %v1783
    %v2098 = vunpack.c.h.b16 %v1783
    %v2099 = vunpack.c.l.b16 %v1784
    %v2100 = vunpack.c.h.b16 %v1784
    %v2101 = vunpack.c.l.b16 %v1785
    %v2102 = vunpack.c.h.b16 %v1785
    %v2103 = vunpack.c.l.b16 %v1786
    %v2104 = vunpack.c.h.b16 %v1786
    %v2105 = vunpack.c.l.b16 %v1787
    %v2106 = vunpack.c.h.b16 %v1787
    %v2107 = vunpack.c.l.b16 %v1788
    %v2108 = vunpack.c.h.b16 %v1788
    %v2109 = vunpack.c.l.b16 %v1789
    %v2110 = vunpack.c.h.b16 %v1789
    %v2111 = vunpack.c.l.b16 %v1790
    %v2112 = vunpack.c.h.b16 %v1790
    %v2113 = vunpack.c.l.b16 %v1791
    %v2114 = vunpack.c.h.b16 %v1791
    %v2115 = vunpack.c.l.b16 %v1792
    %v2116 = vunpack.c.h.b16 %v1792
    %v2117 = vunpack.c.l.b16 %v1793
    %v2118 = vunpack.c.h.b16 %v1793
    %v2119 = vunpack.c.l.b16 %v1794
    %v2120 = vunpack.c.h.b16 %v1794
    %v2121 = vunpack.c.l.b16 %v1795
    %v2122 = vunpack.c.h.b16 %v1795
    %v2123 = vunpack.c.l.b16 %v1796
    %v2124 = vunpack.c.h.b16 %v1796
    %v2125 = vunpack.c.l.b16 %v1797
    %v2126 = vunpack.c.h.b16 %v1797
    %v2127 = vunpack.c.l.b16 %v1798
    %v2128 = vunpack.c.h.b16 %v1798
    %v2129 = vunpack.c.l.b16 %v1799
    %v2130 = vunpack.c.h.b16 %v1799
    %v2131 = vunpack.c.l.b16 %v1800
    %v2132 = vunpack.c.h.b16 %v1800
    %v2133 = vunpack.c.l.b16 %v1801
    %v2134 = vunpack.c.h.b16 %v1801
    %v2135 = vunpack.c.l.b16 %v1802
    %v2136 = vunpack.c.h.b16 %v1802
    %v2137 = vunpack.c.l.b16 %v1803
    %v2138 = vunpack.c.h.b16 %v1803
    %v2139 = vunpack.c.l.b16 %v1804
    %v2140 = vunpack.c.h.b16 %v1804
    %v2141 = vunpack.c.l.b16 %v1805
    %v2142 = vunpack.c.h.b16 %v1805
    %v2143 = vunpack.c.l.b16 %v1806
    %v2144 = vunpack.c.h.b16 %v1806
    %v2145 = vunpack.c.l.b16 %v1807
    %v2146 = vunpack.c.h.b16 %v1807
    %v2147 = vunpack.c.l.b16 %v1808
    %v2148 = vunpack.c.h.b16 %v1808
    %v2149 = vunpack.c.l.b16 %v1809
    %v2150 = vunpack.c.h.b16 %v1809
    %v2151 = vunpack.c.l.b16 %v1810
    %v2152 = vunpack.c.h.b16 %v1810
    %v2153 = vunpack.c.l.b16 %v1811
    %v2154 = vunpack.c.h.b16 %v1811
    %v2155 = vunpack.c.l.b16 %v1812
    %v2156 = vunpack.c.h.b16 %v1812
    %v2157 = vunpack.c.l.b16 %v1813
    %v2158 = vunpack.c.h.b16 %v1813
    %v2159 = vunpack.c.l.b16 %v1814
    %v2160 = vunpack.c.h.b16 %v1814
    %v2161 = vunpack.c.l.b16 %v1815
    %v2162 = vunpack.c.h.b16 %v1815
    %v2163 = vunpack.c.l.b16 %v1816
    %v2164 = vunpack.c.h.b16 %v1816
    %v2165 = vunpack.c.l.b16 %v1817
    %v2166 = vunpack.c.h.b16 %v1817
    %v2167 = vunpack.c.l.b16 %v1818
    %v2168 = vunpack.c.h.b16 %v1818
    %v2169 = vunpack.c.l.b16 %v1819
    %v2170 = vunpack.c.h.b16 %v1819
    %v2171 = vunpack.c.l.b16 %v1820
    %v2172 = vunpack.c.h.b16 %v1820
    %v2173 = vunpack.c.l.b16 %v1821
    %v2174 = vunpack.c.h.b16 %v1821
    %v2175 = vunpack.c.l.b16 %v1822
    %v2176 = vunpack.c.h.b16 %v1822
    %v2177 = vunpack.c.l.b16 %v1823
    %v2178 = vunpack.c.h.b16 %v1823
    %v2179 = vunpack.c.l.b16 %v1824
    %v2180 = vunpack.c.h.b16 %v1824
    %v2181 = vunpack.c.l.b16 %v1825
    %v2182 = vunpack.c.h.b16 %v1825
    %v2183 = vunpack.c.l.b16 %v1826
    %v2184 = vunpack.c.h.b16 %v1826
    %v2185 = vunpack.c.l.b16 %v1827
    %v2186 = vunpack.c.h.b16 %v1827
    %v2187 = vunpack.c.l.b16 %v1828
    %v2188 = vunpack.c.h.b16 %v1828
    %v2189 = vunpack.c.l.b16 %v1829
    %v2190 = vunpack.c.h.b16 %v1829
    %v2191 = vunpack.c.l.b16 %v1830
    %v2192 = vunpack.c.h.b16 %v1830
    %v2193 = vunpack.c.l.b16 %v1831
    %v2194 = vunpack.c.h.b16 %v1831
    %v2195 = vunpack.c.l.b16 %v1832
    %v2196 = vunpack.c.h.b16 %v1832
    %v2197 = vunpack.c.l.b16 %v1833
    %v2198 = vunpack.c.h.b16 %v1833
    %v2199 = vunpack.c.l.b16 %v1834
    %v2200 = vunpack.c.h.b16 %v1834
    %v2201 = vunpack.c.l.b16 %v1835
    %v2202 = vunpack.c.h.b16 %v1835
    %v2203 = vunpack.c.l.b16 %v1836
    %v2204 = vunpack.c.h.b16 %v1836
    %v2205 = vunpack.c.l.b16 %v1837
    %v2206 = vunpack.c.h.b16 %v1837
    %v2207 = vunpack.c.l.b16 %v1838
    %v2208 = vunpack.c.h.b16 %v1838
    %v2209 = vunpack.c.l.b16 %v1839
    %v2210 = vunpack.c.h.b16 %v1839
    %v2211 = vunpack.c.l.b16 %v1840
    %v2212 = vunpack.c.h.b16 %v1840
    %v2213 = vunpack.c.l.b16 %v1841
    %v2214 = vunpack.c.h.b16 %v1841
    %v2215 = vunpack.c.l.b16 %v1842
    %v2216 = vunpack.c.h.b16 %v1842
    %v2217 = vunpack.c.l.b16 %v1843
    %v2218 = vunpack.c.h.b16 %v1843
    %v2219 = vunpack.c.l.b16 %v1844
    %v2220 = vunpack.c.h.b16 %v1844
    %v2221 = vunpack.c.l.b16 %v1845
    %v2222 = vunpack.c.h.b16 %v1845
    %v2223 = vunpack.c.l.b16 %v1846
    %v2224 = vunpack.c.h.b16 %v1846
    %v2225 = vunpack.c.l.b16 %v1847
    %v2226 = vunpack.c.h.b16 %v1847
    %v2227 = vunpack.c.l.b16 %v1848
    %v2228 = vunpack.c.h.b16 %v1848
    %v2229 = vunpack.c.l.b16 %v1849
    %v2230 = vunpack.c.h.b16 %v1849
    %v2231 = vunpack.c.l.b16 %v1850
    %v2232 = vunpack.c.h.b16 %v1850
    %v2233 = vunpack.c.l.b16 %v1851
    %v2234 = vunpack.c.h.b16 %v1851
    %v2235 = vunpack.c.l.b16 %v1852
    %v2236 = vunpack.c.h.b16 %v1852
    %v2237 = vunpack.c.l.b16 %v1853
    %v2238 = vunpack.c.h.b16 %v1853
    %v2239 = vunpack.c.l.b16 %v1854
    %v2240 = vunpack.c.h.b16 %v1854
    %v2241 = vunpack.c.l.b16 %v1855
    %v2242 = vunpack.c.h.b16 %v1855
    %v2243 = vunpack.c.l.b16 %v1856
    %v2244 = vunpack.c.h.b16 %v1856
    %v2245 = vunpack.c.l.b16 %v1857
    %v2246 = vunpack.c.h.b16 %v1857
    %v2247 = vunpack.c.l.b16 %v1858
    %v2248 = vunpack.c.h.b16 %v1858
    %v2249 = vunpack.c.l.b16 %v1859
    %v2250 = vunpack.c.h.b16 %v1859
    %v2251 = vunpack.c.l.b16 %v1860
    %v2252 = vunpack.c.h.b16 %v1860
    %v2253 = vunpack.c.l.b16 %v1861
    %v2254 = vunpack.c.h.b16 %v1861
    %v2255 = vunpack.c.l.b16 %v1862
    %v2256 = vunpack.c.h.b16 %v1862
    %v2257 = vunpack.c.l.b16 %v1863
    %v2258 = vunpack.c.h.b16 %v1863
    %v2259 = vpack.c.b16 %v2007, %v2003
    %v2260 = vpack.c.b16 %v2008, %v2004
    %v2261 = vpack.c.b16 %v2009, %v2005
    %v2262 = vpack.c.b16 %v2010, %v2006
    %v2263 = vpack.c.b16 %v2015, %v2011
    %v2264 = vpack.c.b16 %v2016, %v2012
    %v2265 = vpack.c.b16 %v2017, %v2013
    %v2266 = vpack.c.b16 %v2018, %v2014
    %v2267 = vpack.c.b16 %v2023, %v2019
    %v2268 = vpack.c.b16 %v2024, %v2020
    %v2269 = vpack.c.b16 %v2025, %v2021
    %v2270 = vpack.c.b16 %v2026, %v2022
    %v2271 = vpack.c.b16 %v2031, %v2027
    %v2272 = vpack.c.b16 %v2032, %v2028
    %v2273 = vpack.c.b16 %v2033, %v2029
    %v2274 = vpack.c.b16 %v2034, %v2030
    %v2275 = vpack.c.b16 %v2039, %v2035
    %v2276 = vpack.c.b16 %v2040, %v2036
    %v2277 = vpack.c.b16 %v2041, %v2037
    %v2278 = vpack.c.b16 %v2042, %v2038
    %v2279 = vpack.c.b16 %v2047, %v2043
    %v2280 = vpack.c.b16 %v2048, %v2044
    %v2281 = vpack.c.b16 %v2049, %v2045
    %v2282 = vpack.c.b16 %v2050, %v2046
    %v2283 = vpack.c.b16 %v2055, %v2051
    %v2284 = vpack.c.b16 %v2056, %v2052
    %v2285 = vpack.c.b16 %v2057, %v2053
    %v2286 = vpack.c.b16 %v2058, %v2054
    %v2287 = vpack.c.b16 %v2063, %v2059
    %v2288 = vpack.c.b16 %v2064, %v2060
    %v2289 = vpack.c.b16 %v2065, %v2061
    %v2290 = vpack.c.b16 %v2066, %v2062
    %v2291 = vpack.c.b16 %v2071, %v2067
    %v2292 = vpack.c.b16 %v2072, %v2068
    %v2293 = vpack.c.b16 %v2073, %v2069
    %v2294 = vpack.c.b16 %v2074, %v2070
    %v2295 = vpack.c.b16 %v2079, %v2075
    %v2296 = vpack.c.b16 %v2080, %v2076
    %v2297 = vpack.c.b16 %v2081, %v2077
    %v2298 = vpack.c.b16 %v2082, %v2078
    %v2299 = vpack.c.b16 %v2087, %v2083
    %v2300 = vpack.c.b16 %v2088, %v2084
    %v2301 = vpack.c.b16 %v2089, %v2085
    %v2302 = vpack.c.b16 %v2090, %v2086
    %v2303 = vpack.c.b16 %v2095, %v2091
    %v2304 = vpack.c.b16 %v2096, %v2092
    %v2305 = vpack.c.b16 %v2097, %v2093
    %v2306 = vpack.c.b16 %v2098, %v2094
    %v2307 = vpack.c.b16 %v2103, %v2099
    %v2308 = vpack.c.b16 %v2104, %v2100
    %v2309 = vpack.c.b16 %v2105, %v2101
    %v2310 = vpack.c.b16 %v2106, %v2102
    %v2311 = vpack.c.b16 %v2111, %v2107
    %v2312 = vpack.c.b16 %v2112, %v2108
    %v2313 = vpack.c.b16 %v2113, %v2109
    %v2314 = vpack.c.b16 %v2114, %v2110
    %v2315 = vpack.c.b16 %v2119, %v2115
    %v2316 = vpack.c.b16 %v2120, %v2116
    %v2317 = vpack.c.b16 %v2121, %v2117
    %v2318 = vpack.c.b16 %v2122, %v2118
    %v2319 = vpack.c.b16 %v2127, %v2123
    %v2320 = vpack.c.b16 %v2128, %v2124
    %v2321 = vpack.c.b16 %v2129, %v2125
    %v2322 = vpack.c.b16 %v2130, %v2126
    %v2323 = vpack.c.b16 %v2135, %v2131
    %v2324 = vpack.c.b16 %v2136, %v2132
    %v2325 = vpack.c.b16 %v2137, %v2133
    %v2326 = vpack.c.b16 %v2138, %v2134
    %v2327 = vpack.c.b16 %v2143, %v2139
    %v2328 = vpack.c.b16 %v2144, %v2140
    %v2329 = vpack.c.b16 %v2145, %v2141
    %v2330 = vpack.c.b16 %v2146, %v2142
    %v2331 = vpack.c.b16 %v2151, %v2147
    %v2332 = vpack.c.b16 %v2152, %v2148
    %v2333 = vpack.c.b16 %v2153, %v2149
    %v2334 = vpack.c.b16 %v2154, %v2150
    %v2335 = vpack.c.b16 %v2159, %v2155
    %v2336 = vpack.c.b16 %v2160, %v2156
    %v2337 = vpack.c.b16 %v2161, %v2157
    %v2338 = vpack.c.b16 %v2162, %v2158
    %v2339 = vpack.c.b16 %v2167, %v2163
    %v2340 = vpack.c.b16 %v2168, %v2164
    %v2341 = vpack.c.b16 %v2169, %v2165
    %v2342 = vpack.c.b16 %v2170, %v2166
    %v2343 = vpack.c.b16 %v2175, %v2171
    %v2344 = vpack.c.b16 %v2176, %v2172
    %v2345 = vpack.c.b16 %v2177, %v2173
    %v2346 = vpack.c.b16 %v2178, %v2174
    %v2347 = vpack.c.b16 %v2183, %v2179
    %v2348 = vpack.c.b16 %v2184, %v2180
    %v2349 = vpack.c.b16 %v2185, %v2181
    %v2350 = vpack.c.b16 %v2186, %v2182
    %v2351 = vpack.c.b16 %v2191, %v2187
    %v2352 = vpack.c.b16 %v2192, %v2188
    %v2353 = vpack.c.b16 %v2193, %v2189
    %v2354 = vpack.c.b16 %v2194, %v2190
    %v2355 = vpack.c.b16 %v2199, %v2195
    %v2356 = vpack.c.b16 %v2200, %v2196
    %v2357 = vpack.c.b16 %v2201, %v2197
    %v2358 = vpack.c.b16 %v2202, %v2198
    %v2359 = vpack.c.b16 %v2207, %v2203
    %v2360 = vpack.c.b16 %v2208, %v2204
    %v2361 = vpack.c.b16 %v2209, %v2205
    %v2362 = vpack.c.b16 %v2210, %v2206
    %v2363 = vpack.c.b16 %v2215, %v2211
    %v2364 = vpack.c.b16 %v2216, %v2212
    %v2365 = vpack.c.b16 %v2217, %v2213
    %v2366 = vpack.c.b16 %v2218, %v2214
    %v2367 = vpack.c.b16 %v2223, %v2219
    %v2368 = vpack.c.b16 %v2224, %v2220
    %v2369 = vpack.c.b16 %v2225, %v2221
    %v2370 = vpack.c.b16 %v2226, %v2222
    %v2371 = vpack.c.b16 %v2231, %v2227
    %v2372 = vpack.c.b16 %v2232, %v2228
    %v2373 = vpack.c.b16 %v2233, %v2229
    %v2374 = vpack.c.b16 %v2234, %v2230
    %v2375 = vpack.c.b16 %v2239, %v2235
    %v2376 = vpack.c.b16 %v2240, %v2236
    %v2377 = vpack.c.b16 %v2241, %v2237
    %v2378 = vpack.c.b16 %v2242, %v2238
    %v2379 = vpack.c.b16 %v2247, %v2243
    %v2380 = vpack.c.b16 %v2248, %v2244
    %v2381 = vpack.c.b16 %v2249, %v2245
    %v2382 = vpack.c.b16 %v2250, %v2246
    %v2383 = vpack.c.b16 %v2255, %v2251
    %v2384 = vpack.c.b16 %v2256, %v2252
    %v2385 = vpack.c.b16 %v2257, %v2253
    %v2386 = vpack.c.b16 %v2258, %v2254
    %2515 = vmatpush.bf16.msra.mxu0 %v2287
    %2516 = vmatpush.bf16.msra.mxu0 %v2283
    %2517 = vmatpush.bf16.msra.mxu0 %v2279
    %2518 = vmatpush.bf16.msra.mxu0 %v2275
    %2519 = vmatpush.bf16.msra.mxu0 %v2271
    %2520 = vmatpush.bf16.msra.mxu0 %v2267
    %2521 = vmatpush.bf16.msra.mxu0 %v2263
    %2522 = vmatpush.bf16.msra.mxu0 %v2259
    %2523 = vmatmul.bf16.gmra.mxu0 %v1732
    %v2524 = vpop.f32.mrf.mxu0
    %v2525 = vadd.f32 %v1867, %v2524
    %v2526 = vpop.f32.mrf.mxu0
    %2527 = vdwg.mxu0
    %2528 = vmatpush.bf16.msra.mxu0 %v2319
    %2529 = vmatpush.bf16.msra.mxu0 %v2315
    %2530 = vmatpush.bf16.msra.mxu0 %v2311
    %2531 = vmatpush.bf16.msra.mxu0 %v2307
    %2532 = vmatpush.bf16.msra.mxu0 %v2303
    %2533 = vmatpush.bf16.msra.mxu0 %v2299
    %2534 = vmatpush.bf16.msra.mxu0 %v2295
    %2535 = vmatpush.bf16.msra.mxu0 %v2291
    %2536 = vmatmul.bf16.gmra.mxu0 %v1733
    %v2537 = vpop.f32.mrf.mxu0
    %v2538 = vadd.f32 %v2525, %v2537
    %v2539 = vpop.f32.mrf.mxu0
    %2540 = vdwg.mxu0
    %2541 = vmatpush.bf16.msra.mxu0 %v2351
    %2542 = vmatpush.bf16.msra.mxu0 %v2347
    %2543 = vmatpush.bf16.msra.mxu0 %v2343
    %2544 = vmatpush.bf16.msra.mxu0 %v2339
    %2545 = vmatpush.bf16.msra.mxu0 %v2335
    %2546 = vmatpush.bf16.msra.mxu0 %v2331
    %2547 = vmatpush.bf16.msra.mxu0 %v2327
    %2548 = vmatpush.bf16.msra.mxu0 %v2323
    %2549 = vmatmul.bf16.gmra.mxu0 %v1734
    %v2550 = vpop.f32.mrf.mxu0
    %v2551 = vadd.f32 %v2538, %v2550
    %v2552 = vpop.f32.mrf.mxu0
    %2553 = vdwg.mxu0
    %2554 = vmatpush.bf16.msra.mxu0 %v2383
    %2555 = vmatpush.bf16.msra.mxu0 %v2379
    %2556 = vmatpush.bf16.msra.mxu0 %v2375
    %2557 = vmatpush.bf16.msra.mxu0 %v2371
    %2558 = vmatpush.bf16.msra.mxu0 %v2367
    %2559 = vmatpush.bf16.msra.mxu0 %v2363
    %2560 = vmatpush.bf16.msra.mxu0 %v2359
    %2561 = vmatpush.bf16.msra.mxu0 %v2355
    %2562 = vmatmul.bf16.gmra.mxu0 %v1735
    %v2563 = vpop.f32.mrf.mxu0
    %v2564 = vadd.f32 %v2551, %v2563
    %v2565 = vpop.f32.mrf.mxu0
    %2566 = vdwg.mxu0
    %2567 = vmatpush.bf16.msra.mxu0 %v2288
    %2568 = vmatpush.bf16.msra.mxu0 %v2284
    %2569 = vmatpush.bf16.msra.mxu0 %v2280
    %2570 = vmatpush.bf16.msra.mxu0 %v2276
    %2571 = vmatpush.bf16.msra.mxu0 %v2272
    %2572 = vmatpush.bf16.msra.mxu0 %v2268
    %2573 = vmatpush.bf16.msra.mxu0 %v2264
    %2574 = vmatpush.bf16.msra.mxu0 %v2260
    %2575 = vmatmul.bf16.gmra.mxu0 %v1732
    %v2576 = vpop.f32.mrf.mxu0
    %v2577 = vadd.f32 %v1868, %v2576
    %v2578 = vpop.f32.mrf.mxu0
    %2579 = vdwg.mxu0
    %2580 = vmatpush.bf16.msra.mxu0 %v2320
    %2581 = vmatpush.bf16.msra.mxu0 %v2316
    %2582 = vmatpush.bf16.msra.mxu0 %v2312
    %2583 = vmatpush.bf16.msra.mxu0 %v2308
    %2584 = vmatpush.bf16.msra.mxu0 %v2304
    %2585 = vmatpush.bf16.msra.mxu0 %v2300
    %2586 = vmatpush.bf16.msra.mxu0 %v2296
    %2587 = vmatpush.bf16.msra.mxu0 %v2292
    %2588 = vmatmul.bf16.gmra.mxu0 %v1733
    %v2589 = vpop.f32.mrf.mxu0
    %v2590 = vadd.f32 %v2577, %v2589
    %v2591 = vpop.f32.mrf.mxu0
    %2592 = vdwg.mxu0
    %2593 = vmatpush.bf16.msra.mxu0 %v2352
    %2594 = vmatpush.bf16.msra.mxu0 %v2348
    %2595 = vmatpush.bf16.msra.mxu0 %v2344
    %2596 = vmatpush.bf16.msra.mxu0 %v2340
    %2597 = vmatpush.bf16.msra.mxu0 %v2336
    %2598 = vmatpush.bf16.msra.mxu0 %v2332
    %2599 = vmatpush.bf16.msra.mxu0 %v2328
    %2600 = vmatpush.bf16.msra.mxu0 %v2324
    %2601 = vmatmul.bf16.gmra.mxu0 %v1734
    %v2602 = vpop.f32.mrf.mxu0
    %v2603 = vadd.f32 %v2590, %v2602
    %v2604 = vpop.f32.mrf.mxu0
    %2605 = vdwg.mxu0
    %2606 = vmatpush.bf16.msra.mxu0 %v2384
    %2607 = vmatpush.bf16.msra.mxu0 %v2380
    %2608 = vmatpush.bf16.msra.mxu0 %v2376
    %2609 = vmatpush.bf16.msra.mxu0 %v2372
    %2610 = vmatpush.bf16.msra.mxu0 %v2368
    %2611 = vmatpush.bf16.msra.mxu0 %v2364
    %2612 = vmatpush.bf16.msra.mxu0 %v2360
    %2613 = vmatpush.bf16.msra.mxu0 %v2356
    %2614 = vmatmul.bf16.gmra.mxu0 %v1735
    %v2615 = vpop.f32.mrf.mxu0
    %v2616 = vadd.f32 %v2603, %v2615
    %v2617 = vpop.f32.mrf.mxu0
    %2618 = vdwg.mxu0
    %2619 = vmatpush.bf16.msra.mxu0 %v2289
    %2620 = vmatpush.bf16.msra.mxu0 %v2285
    %2621 = vmatpush.bf16.msra.mxu0 %v2281
    %2622 = vmatpush.bf16.msra.mxu0 %v2277
    %2623 = vmatpush.bf16.msra.mxu0 %v2273
    %2624 = vmatpush.bf16.msra.mxu0 %v2269
    %2625 = vmatpush.bf16.msra.mxu0 %v2265
    %2626 = vmatpush.bf16.msra.mxu0 %v2261
    %2627 = vmatmul.bf16.gmra.mxu0 %v1732
    %v2628 = vpop.f32.mrf.mxu0
    %v2629 = vadd.f32 %v1869, %v2628
    %v2630 = vpop.f32.mrf.mxu0
    %2631 = vdwg.mxu0
    %2632 = vmatpush.bf16.msra.mxu0 %v2321
    %2633 = vmatpush.bf16.msra.mxu0 %v2317
    %2634 = vmatpush.bf16.msra.mxu0 %v2313
    %2635 = vmatpush.bf16.msra.mxu0 %v2309
    %2636 = vmatpush.bf16.msra.mxu0 %v2305
    %2637 = vmatpush.bf16.msra.mxu0 %v2301
    %2638 = vmatpush.bf16.msra.mxu0 %v2297
    %2639 = vmatpush.bf16.msra.mxu0 %v2293
    %2640 = vmatmul.bf16.gmra.mxu0 %v1733
    %v2641 = vpop.f32.mrf.mxu0
    %v2642 = vadd.f32 %v2629, %v2641
    %v2643 = vpop.f32.mrf.mxu0
    %2644 = vdwg.mxu0
    %2645 = vmatpush.bf16.msra.mxu0 %v2353
    %2646 = vmatpush.bf16.msra.mxu0 %v2349
    %2647 = vmatpush.bf16.msra.mxu0 %v2345
    %2648 = vmatpush.bf16.msra.mxu0 %v2341
    %2649 = vmatpush.bf16.msra.mxu0 %v2337
    %2650 = vmatpush.bf16.msra.mxu0 %v2333
    %2651 = vmatpush.bf16.msra.mxu0 %v2329
    %2652 = vmatpush.bf16.msra.mxu0 %v2325
    %2653 = vmatmul.bf16.gmra.mxu0 %v1734
    %v2654 = vpop.f32.mrf.mxu0
    %v2655 = vadd.f32 %v2642, %v2654
    %v2656 = vpop.f32.mrf.mxu0
    %2657 = vdwg.mxu0
    %2658 = vmatpush.bf16.msra.mxu0 %v2385
    %2659 = vmatpush.bf16.msra.mxu0 %v2381
    %2660 = vmatpush.bf16.msra.mxu0 %v2377
    %2661 = vmatpush.bf16.msra.mxu0 %v2373
    %2662 = vmatpush.bf16.msra.mxu0 %v2369
    %2663 = vmatpush.bf16.msra.mxu0 %v2365
    %2664 = vmatpush.bf16.msra.mxu0 %v2361
    %2665 = vmatpush.bf16.msra.mxu0 %v2357
    %2666 = vmatmul.bf16.gmra.mxu0 %v1735
    %v2667 = vpop.f32.mrf.mxu0
    %v2668 = vadd.f32 %v2655, %v2667
    %v2669 = vpop.f32.mrf.mxu0
    %2670 = vdwg.mxu0
    %2671 = vmatpush.bf16.msra.mxu0 %v2290
    %2672 = vmatpush.bf16.msra.mxu0 %v2286
    %2673 = vmatpush.bf16.msra.mxu0 %v2282
    %2674 = vmatpush.bf16.msra.mxu0 %v2278
    %2675 = vmatpush.bf16.msra.mxu0 %v2274
    %2676 = vmatpush.bf16.msra.mxu0 %v2270
    %2677 = vmatpush.bf16.msra.mxu0 %v2266
    %2678 = vmatpush.bf16.msra.mxu0 %v2262
    %2679 = vmatmul.bf16.gmra.mxu0 %v1732
    %v2680 = vpop.f32.mrf.mxu0
    %v2681 = vadd.f32 %v1870, %v2680
    %v2682 = vpop.f32.mrf.mxu0
    %2683 = vdwg.mxu0
    %2684 = vmatpush.bf16.msra.mxu0 %v2322
    %2685 = vmatpush.bf16.msra.mxu0 %v2318
    %2686 = vmatpush.bf16.msra.mxu0 %v2314
    %2687 = vmatpush.bf16.msra.mxu0 %v2310
    %2688 = vmatpush.bf16.msra.mxu0 %v2306
    %2689 = vmatpush.bf16.msra.mxu0 %v2302
    %2690 = vmatpush.bf16.msra.mxu0 %v2298
    %2691 = vmatpush.bf16.msra.mxu0 %v2294
    %2692 = vmatmul.bf16.gmra.mxu0 %v1733
    %v2693 = vpop.f32.mrf.mxu0
    %v2694 = vadd.f32 %v2681, %v2693
    %v2695 = vpop.f32.mrf.mxu0
    %2696 = vdwg.mxu0
    %2697 = vmatpush.bf16.msra.mxu0 %v2354
    %2698 = vmatpush.bf16.msra.mxu0 %v2350
    %2699 = vmatpush.bf16.msra.mxu0 %v2346
    %2700 = vmatpush.bf16.msra.mxu0 %v2342
    %2701 = vmatpush.bf16.msra.mxu0 %v2338
    %2702 = vmatpush.bf16.msra.mxu0 %v2334
    %2703 = vmatpush.bf16.msra.mxu0 %v2330
    %2704 = vmatpush.bf16.msra.mxu0 %v2326
    %2705 = vmatmul.bf16.gmra.mxu0 %v1734
    %v2706 = vpop.f32.mrf.mxu0
    %v2707 = vadd.f32 %v2694, %v2706
    %v2708 = vpop.f32.mrf.mxu0
    %2709 = vdwg.mxu0
    %2710 = vmatpush.bf16.msra.mxu0 %v2386
    %2711 = vmatpush.bf16.msra.mxu0 %v2382
    %2712 = vmatpush.bf16.msra.mxu0 %v2378
    %2713 = vmatpush.bf16.msra.mxu0 %v2374
    %2714 = vmatpush.bf16.msra.mxu0 %v2370
    %2715 = vmatpush.bf16.msra.mxu0 %v2366
    %2716 = vmatpush.bf16.msra.mxu0 %v2362
    %2717 = vmatpush.bf16.msra.mxu0 %v2358
    %2718 = vmatmul.bf16.gmra.mxu0 %v1735
    %v2719 = vpop.f32.mrf.mxu0
    %v2720 = vadd.f32 %v2707, %v2719
    %v2721 = vpop.f32.mrf.mxu0
    %2722 = vdwg.mxu0
    %v2723 = vmax.f32 %v2564, 0.0
    %v2724 = vmax.f32 %v2616, 0.0
    %v2725 = vmax.f32 %v2668, 0.0
    %v2726 = vmax.f32 %v2720, 0.0
    %v2727 = vpack.c.bf16 %v2723, %v2723
    %v2728 = vpack.c.bf16 %v2724, %v2724
    %v2729 = vpack.c.bf16 %v2725, %v2725
    %v2730 = vpack.c.bf16 %v2726, %v2726
    %v2731 = vld [vmem:[#allocation2 + $0xb80] sm:$0xff]
    %v2732 = vld [vmem:[#allocation2 + $0xb90] sm:$0xff]
    %v2733 = vld [vmem:[#allocation2 + $0xba0] sm:$0xff]
    %v2734 = vld [vmem:[#allocation2 + $0xbb0] sm:$0xff]
    %v2735 = vld [vmem:[#allocation2 + $0xbc0] sm:$0xff]
    %v2736 = vld [vmem:[#allocation2 + $0xbd0] sm:$0xff]
    %v2737 = vld [vmem:[#allocation2 + $0xbe0] sm:$0xff]
    %v2738 = vld [vmem:[#allocation2 + $0xbf0] sm:$0xff]
    %v2739 = vld [vmem:[#allocation2 + $0xc00] sm:$0xff]
    %v2740 = vld [vmem:[#allocation2 + $0xc10] sm:$0xff]
    %v2741 = vld [vmem:[#allocation2 + $0xc20] sm:$0xff]
    %v2742 = vld [vmem:[#allocation2 + $0xc30] sm:$0xff]
    %v2743 = vld [vmem:[#allocation2 + $0xc40] sm:$0xff]
    %v2744 = vld [vmem:[#allocation2 + $0xc50] sm:$0xff]
    %v2745 = vld [vmem:[#allocation2 + $0xc60] sm:$0xff]
    %v2746 = vld [vmem:[#allocation2 + $0xc70] sm:$0xff]
    %v2747 = vld [vmem:[#allocation2 + $0xc80] sm:$0xff]
    %v2748 = vld [vmem:[#allocation2 + $0xc90] sm:$0xff]
    %v2749 = vld [vmem:[#allocation2 + $0xca0] sm:$0xff]
    %v2750 = vld [vmem:[#allocation2 + $0xcb0] sm:$0xff]
    %v2751 = vld [vmem:[#allocation2 + $0xcc0] sm:$0xff]
    %v2752 = vld [vmem:[#allocation2 + $0xcd0] sm:$0xff]
    %v2753 = vld [vmem:[#allocation2 + $0xce0] sm:$0xff]
    %v2754 = vld [vmem:[#allocation2 + $0xcf0] sm:$0xff]
    %v2755 = vld [vmem:[#allocation2 + $0xd00] sm:$0xff]
    %v2756 = vld [vmem:[#allocation2 + $0xd10] sm:$0xff]
    %v2757 = vld [vmem:[#allocation2 + $0xd20] sm:$0xff]
    %v2758 = vld [vmem:[#allocation2 + $0xd30] sm:$0xff]
    %v2759 = vld [vmem:[#allocation2 + $0xd40] sm:$0xff]
    %v2760 = vld [vmem:[#allocation2 + $0xd50] sm:$0xff]
    %v2761 = vld [vmem:[#allocation2 + $0xd60] sm:$0xff]
    %v2762 = vld [vmem:[#allocation2 + $0xd70] sm:$0xff]
    %v2763 = vld [vmem:[#allocation2 + $0xd80] sm:$0xff]
    %v2764 = vld [vmem:[#allocation2 + $0xd90] sm:$0xff]
    %v2765 = vld [vmem:[#allocation2 + $0xda0] sm:$0xff]
    %v2766 = vld [vmem:[#allocation2 + $0xdb0] sm:$0xff]
    %v2767 = vld [vmem:[#allocation2 + $0xdc0] sm:$0xff]
    %v2768 = vld [vmem:[#allocation2 + $0xdd0] sm:$0xff]
    %v2769 = vld [vmem:[#allocation2 + $0xde0] sm:$0xff]
    %v2770 = vld [vmem:[#allocation2 + $0xdf0] sm:$0xff]
    %v2771 = vld [vmem:[#allocation2 + $0xe00] sm:$0xff]
    %v2772 = vld [vmem:[#allocation2 + $0xe10] sm:$0xff]
    %v2773 = vld [vmem:[#allocation2 + $0xe20] sm:$0xff]
    %v2774 = vld [vmem:[#allocation2 + $0xe30] sm:$0xff]
    %v2775 = vld [vmem:[#allocation2 + $0xe40] sm:$0xff]
    %v2776 = vld [vmem:[#allocation2 + $0xe50] sm:$0xff]
    %v2777 = vld [vmem:[#allocation2 + $0xe60] sm:$0xff]
    %v2778 = vld [vmem:[#allocation2 + $0xe70] sm:$0xff]
    %v2779 = vld [vmem:[#allocation2 + $0xe80] sm:$0xff]
    %v2780 = vld [vmem:[#allocation2 + $0xe90] sm:$0xff]
    %v2781 = vld [vmem:[#allocation2 + $0xea0] sm:$0xff]
    %v2782 = vld [vmem:[#allocation2 + $0xeb0] sm:$0xff]
    %v2783 = vld [vmem:[#allocation2 + $0xec0] sm:$0xff]
    %v2784 = vld [vmem:[#allocation2 + $0xed0] sm:$0xff]
    %v2785 = vld [vmem:[#allocation2 + $0xee0] sm:$0xff]
    %v2786 = vld [vmem:[#allocation2 + $0xef0] sm:$0xff]
    %v2787 = vld [vmem:[#allocation2 + $0xf00] sm:$0xff]
    %v2788 = vld [vmem:[#allocation2 + $0xf10] sm:$0xff]
    %v2789 = vld [vmem:[#allocation2 + $0xf20] sm:$0xff]
    %v2790 = vld [vmem:[#allocation2 + $0xf30] sm:$0xff]
    %v2791 = vld [vmem:[#allocation2 + $0xf40] sm:$0xff]
    %v2792 = vld [vmem:[#allocation2 + $0xf50] sm:$0xff]
    %v2793 = vld [vmem:[#allocation2 + $0xf60] sm:$0xff]
    %v2794 = vld [vmem:[#allocation2 + $0xf70] sm:$0xff]
    %s2795 = scalar_lea.vmem [#allocation5], 5
    %v2796 = vld [vmem:[%s2795] ss:$8 sm:$0x3]
    %v2798 = vperm.slane %v2796, 0
    %v2799 = vperm.slane %v2796, 1
    %v2866 = vunpack.c.l.b16 %v2731
    %v2867 = vunpack.c.h.b16 %v2731
    %v2868 = vunpack.c.l.b16 %v2732
    %v2869 = vunpack.c.h.b16 %v2732
    %v2870 = vunpack.c.l.b16 %v2733
    %v2871 = vunpack.c.h.b16 %v2733
    %v2872 = vunpack.c.l.b16 %v2734
    %v2873 = vunpack.c.h.b16 %v2734
    %v2874 = vunpack.c.l.b16 %v2735
    %v2875 = vunpack.c.h.b16 %v2735
    %v2876 = vunpack.c.l.b16 %v2736
    %v2877 = vunpack.c.h.b16 %v2736
    %v2878 = vunpack.c.l.b16 %v2737
    %v2879 = vunpack.c.h.b16 %v2737
    %v2880 = vunpack.c.l.b16 %v2738
    %v2881 = vunpack.c.h.b16 %v2738
    %v2882 = vunpack.c.l.b16 %v2739
    %v2883 = vunpack.c.h.b16 %v2739
    %v2884 = vunpack.c.l.b16 %v2740
    %v2885 = vunpack.c.h.b16 %v2740
    %v2886 = vunpack.c.l.b16 %v2741
    %v2887 = vunpack.c.h.b16 %v2741
    %v2888 = vunpack.c.l.b16 %v2742
    %v2889 = vunpack.c.h.b16 %v2742
    %v2890 = vunpack.c.l.b16 %v2743
    %v2891 = vunpack.c.h.b16 %v2743
    %v2892 = vunpack.c.l.b16 %v2744
    %v2893 = vunpack.c.h.b16 %v2744
    %v2894 = vunpack.c.l.b16 %v2745
    %v2895 = vunpack.c.h.b16 %v2745
    %v2896 = vunpack.c.l.b16 %v2746
    %v2897 = vunpack.c.h.b16 %v2746
    %v2898 = vunpack.c.l.b16 %v2747
    %v2899 = vunpack.c.h.b16 %v2747
    %v2900 = vunpack.c.l.b16 %v2748
    %v2901 = vunpack.c.h.b16 %v2748
    %v2902 = vunpack.c.l.b16 %v2749
    %v2903 = vunpack.c.h.b16 %v2749
    %v2904 = vunpack.c.l.b16 %v2750
    %v2905 = vunpack.c.h.b16 %v2750
    %v2906 = vunpack.c.l.b16 %v2751
    %v2907 = vunpack.c.h.b16 %v2751
    %v2908 = vunpack.c.l.b16 %v2752
    %v2909 = vunpack.c.h.b16 %v2752
    %v2910 = vunpack.c.l.b16 %v2753
    %v2911 = vunpack.c.h.b16 %v2753
    %v2912 = vunpack.c.l.b16 %v2754
    %v2913 = vunpack.c.h.b16 %v2754
    %v2914 = vunpack.c.l.b16 %v2755
    %v2915 = vunpack.c.h.b16 %v2755
    %v2916 = vunpack.c.l.b16 %v2756
    %v2917 = vunpack.c.h.b16 %v2756
    %v2918 = vunpack.c.l.b16 %v2757
    %v2919 = vunpack.c.h.b16 %v2757
    %v2920 = vunpack.c.l.b16 %v2758
    %v2921 = vunpack.c.h.b16 %v2758
    %v2922 = vunpack.c.l.b16 %v2759
    %v2923 = vunpack.c.h.b16 %v2759
    %v2924 = vunpack.c.l.b16 %v2760
    %v2925 = vunpack.c.h.b16 %v2760
    %v2926 = vunpack.c.l.b16 %v2761
    %v2927 = vunpack.c.h.b16 %v2761
    %v2928 = vunpack.c.l.b16 %v2762
    %v2929 = vunpack.c.h.b16 %v2762
    %v2930 = vunpack.c.l.b16 %v2763
    %v2931 = vunpack.c.h.b16 %v2763
    %v2932 = vunpack.c.l.b16 %v2764
    %v2933 = vunpack.c.h.b16 %v2764
    %v2934 = vunpack.c.l.b16 %v2765
    %v2935 = vunpack.c.h.b16 %v2765
    %v2936 = vunpack.c.l.b16 %v2766
    %v2937 = vunpack.c.h.b16 %v2766
    %v2938 = vunpack.c.l.b16 %v2767
    %v2939 = vunpack.c.h.b16 %v2767
    %v2940 = vunpack.c.l.b16 %v2768
    %v2941 = vunpack.c.h.b16 %v2768
    %v2942 = vunpack.c.l.b16 %v2769
    %v2943 = vunpack.c.h.b16 %v2769
    %v2944 = vunpack.c.l.b16 %v2770
    %v2945 = vunpack.c.h.b16 %v2770
    %v2946 = vunpack.c.l.b16 %v2771
    %v2947 = vunpack.c.h.b16 %v2771
    %v2948 = vunpack.c.l.b16 %v2772
    %v2949 = vunpack.c.h.b16 %v2772
    %v2950 = vunpack.c.l.b16 %v2773
    %v2951 = vunpack.c.h.b16 %v2773
    %v2952 = vunpack.c.l.b16 %v2774
    %v2953 = vunpack.c.h.b16 %v2774
    %v2954 = vunpack.c.l.b16 %v2775
    %v2955 = vunpack.c.h.b16 %v2775
    %v2956 = vunpack.c.l.b16 %v2776
    %v2957 = vunpack.c.h.b16 %v2776
    %v2958 = vunpack.c.l.b16 %v2777
    %v2959 = vunpack.c.h.b16 %v2777
    %v2960 = vunpack.c.l.b16 %v2778
    %v2961 = vunpack.c.h.b16 %v2778
    %v2962 = vunpack.c.l.b16 %v2779
    %v2963 = vunpack.c.h.b16 %v2779
    %v2964 = vunpack.c.l.b16 %v2780
    %v2965 = vunpack.c.h.b16 %v2780
    %v2966 = vunpack.c.l.b16 %v2781
    %v2967 = vunpack.c.h.b16 %v2781
    %v2968 = vunpack.c.l.b16 %v2782
    %v2969 = vunpack.c.h.b16 %v2782
    %v2970 = vunpack.c.l.b16 %v2783
    %v2971 = vunpack.c.h.b16 %v2783
    %v2972 = vunpack.c.l.b16 %v2784
    %v2973 = vunpack.c.h.b16 %v2784
    %v2974 = vunpack.c.l.b16 %v2785
    %v2975 = vunpack.c.h.b16 %v2785
    %v2976 = vunpack.c.l.b16 %v2786
    %v2977 = vunpack.c.h.b16 %v2786
    %v2978 = vunpack.c.l.b16 %v2787
    %v2979 = vunpack.c.h.b16 %v2787
    %v2980 = vunpack.c.l.b16 %v2788
    %v2981 = vunpack.c.h.b16 %v2788
    %v2982 = vunpack.c.l.b16 %v2789
    %v2983 = vunpack.c.h.b16 %v2789
    %v2984 = vunpack.c.l.b16 %v2790
    %v2985 = vunpack.c.h.b16 %v2790
    %v2986 = vunpack.c.l.b16 %v2791
    %v2987 = vunpack.c.h.b16 %v2791
    %v2988 = vunpack.c.l.b16 %v2792
    %v2989 = vunpack.c.h.b16 %v2792
    %v2990 = vunpack.c.l.b16 %v2793
    %v2991 = vunpack.c.h.b16 %v2793
    %v2992 = vunpack.c.l.b16 %v2794
    %v2993 = vunpack.c.h.b16 %v2794
    %v2994 = vpack.c.b16 %v2868, %v2866
    %v2995 = vpack.c.b16 %v2869, %v2867
    %v2996 = vpack.c.b16 %v2872, %v2870
    %v2997 = vpack.c.b16 %v2873, %v2871
    %v2998 = vpack.c.b16 %v2876, %v2874
    %v2999 = vpack.c.b16 %v2877, %v2875
    %v3000 = vpack.c.b16 %v2880, %v2878
    %v3001 = vpack.c.b16 %v2881, %v2879
    %v3002 = vpack.c.b16 %v2884, %v2882
    %v3003 = vpack.c.b16 %v2885, %v2883
    %v3004 = vpack.c.b16 %v2888, %v2886
    %v3005 = vpack.c.b16 %v2889, %v2887
    %v3006 = vpack.c.b16 %v2892, %v2890
    %v3007 = vpack.c.b16 %v2893, %v2891
    %v3008 = vpack.c.b16 %v2896, %v2894
    %v3009 = vpack.c.b16 %v2897, %v2895
    %v3010 = vpack.c.b16 %v2900, %v2898
    %v3011 = vpack.c.b16 %v2901, %v2899
    %v3012 = vpack.c.b16 %v2904, %v2902
    %v3013 = vpack.c.b16 %v2905, %v2903
    %v3014 = vpack.c.b16 %v2908, %v2906
    %v3015 = vpack.c.b16 %v2909, %v2907
    %v3016 = vpack.c.b16 %v2912, %v2910
    %v3017 = vpack.c.b16 %v2913, %v2911
    %v3018 = vpack.c.b16 %v2916, %v2914
    %v3019 = vpack.c.b16 %v2917, %v2915
    %v3020 = vpack.c.b16 %v2920, %v2918
    %v3021 = vpack.c.b16 %v2921, %v2919
    %v3022 = vpack.c.b16 %v2924, %v2922
    %v3023 = vpack.c.b16 %v2925, %v2923
    %v3024 = vpack.c.b16 %v2928, %v2926
    %v3025 = vpack.c.b16 %v2929, %v2927
    %v3026 = vpack.c.b16 %v2932, %v2930
    %v3027 = vpack.c.b16 %v2933, %v2931
    %v3028 = vpack.c.b16 %v2936, %v2934
    %v3029 = vpack.c.b16 %v2937, %v2935
    %v3030 = vpack.c.b16 %v2940, %v2938
    %v3031 = vpack.c.b16 %v2941, %v2939
    %v3032 = vpack.c.b16 %v2944, %v2942
    %v3033 = vpack.c.b16 %v2945, %v2943
    %v3034 = vpack.c.b16 %v2948, %v2946
    %v3035 = vpack.c.b16 %v2949, %v2947
    %v3036 = vpack.c.b16 %v2952, %v2950
    %v3037 = vpack.c.b16 %v2953, %v2951
    %v3038 = vpack.c.b16 %v2956, %v2954
    %v3039 = vpack.c.b16 %v2957, %v2955
    %v3040 = vpack.c.b16 %v2960, %v2958
    %v3041 = vpack.c.b16 %v2961, %v2959
    %v3042 = vpack.c.b16 %v2964, %v2962
    %v3043 = vpack.c.b16 %v2965, %v2963
    %v3044 = vpack.c.b16 %v2968, %v2966
    %v3045 = vpack.c.b16 %v2969, %v2967
    %v3046 = vpack.c.b16 %v2972, %v2970
    %v3047 = vpack.c.b16 %v2973, %v2971
    %v3048 = vpack.c.b16 %v2976, %v2974
    %v3049 = vpack.c.b16 %v2977, %v2975
    %v3050 = vpack.c.b16 %v2980, %v2978
    %v3051 = vpack.c.b16 %v2981, %v2979
    %v3052 = vpack.c.b16 %v2984, %v2982
    %v3053 = vpack.c.b16 %v2985, %v2983
    %v3054 = vpack.c.b16 %v2988, %v2986
    %v3055 = vpack.c.b16 %v2989, %v2987
    %v3056 = vpack.c.b16 %v2992, %v2990
    %v3057 = vpack.c.b16 %v2993, %v2991
    %3122 = vmatpush.bf16.msra.mxu0 %v3008
    %3123 = vmatpush.bf16.msra.mxu0 %v3006
    %3124 = vmatpush.bf16.msra.mxu0 %v3004
    %3125 = vmatpush.bf16.msra.mxu0 %v3002
    %3126 = vmatpush.bf16.msra.mxu0 %v3000
    %3127 = vmatpush.bf16.msra.mxu0 %v2998
    %3128 = vmatpush.bf16.msra.mxu0 %v2996
    %3129 = vmatpush.bf16.msra.mxu0 %v2994
    %3130 = vmatmul.bf16.gmra.mxu0 %v2727
    %v3131 = vpop.f32.mrf.mxu0
    %v3132 = vadd.f32 %v2798, %v3131
    %v3133 = vpop.f32.mrf.mxu0
    %3134 = vdwg.mxu0
    %3135 = vmatpush.bf16.msra.mxu0 %v3024
    %3136 = vmatpush.bf16.msra.mxu0 %v3022
    %3137 = vmatpush.bf16.msra.mxu0 %v3020
    %3138 = vmatpush.bf16.msra.mxu0 %v3018
    %3139 = vmatpush.bf16.msra.mxu0 %v3016
    %3140 = vmatpush.bf16.msra.mxu0 %v3014
    %3141 = vmatpush.bf16.msra.mxu0 %v3012
    %3142 = vmatpush.bf16.msra.mxu0 %v3010
    %3143 = vmatmul.bf16.gmra.mxu0 %v2728
    %v3144 = vpop.f32.mrf.mxu0
    %v3145 = vadd.f32 %v3132, %v3144
    %v3146 = vpop.f32.mrf.mxu0
    %3147 = vdwg.mxu0
    %3148 = vmatpush.bf16.msra.mxu0 %v3040
    %3149 = vmatpush.bf16.msra.mxu0 %v3038
    %3150 = vmatpush.bf16.msra.mxu0 %v3036
    %3151 = vmatpush.bf16.msra.mxu0 %v3034
    %3152 = vmatpush.bf16.msra.mxu0 %v3032
    %3153 = vmatpush.bf16.msra.mxu0 %v3030
    %3154 = vmatpush.bf16.msra.mxu0 %v3028
    %3155 = vmatpush.bf16.msra.mxu0 %v3026
    %3156 = vmatmul.bf16.gmra.mxu0 %v2729
    %v3157 = vpop.f32.mrf.mxu0
    %v3158 = vadd.f32 %v3145, %v3157
    %v3159 = vpop.f32.mrf.mxu0
    %3160 = vdwg.mxu0
    %3161 = vmatpush.bf16.msra.mxu0 %v3056
    %3162 = vmatpush.bf16.msra.mxu0 %v3054
    %3163 = vmatpush.bf16.msra.mxu0 %v3052
    %3164 = vmatpush.bf16.msra.mxu0 %v3050
    %3165 = vmatpush.bf16.msra.mxu0 %v3048
    %3166 = vmatpush.bf16.msra.mxu0 %v3046
    %3167 = vmatpush.bf16.msra.mxu0 %v3044
    %3168 = vmatpush.bf16.msra.mxu0 %v3042
    %3169 = vmatmul.bf16.gmra.mxu0 %v2730
    %v3170 = vpop.f32.mrf.mxu0
    %v3171 = vadd.f32 %v3158, %v3170
    %v3172 = vpop.f32.mrf.mxu0
    %3173 = vdwg.mxu0
    %3174 = vmatpush.bf16.msra.mxu0 %v3009
    %3175 = vmatpush.bf16.msra.mxu0 %v3007
    %3176 = vmatpush.bf16.msra.mxu0 %v3005
    %3177 = vmatpush.bf16.msra.mxu0 %v3003
    %3178 = vmatpush.bf16.msra.mxu0 %v3001
    %3179 = vmatpush.bf16.msra.mxu0 %v2999
    %3180 = vmatpush.bf16.msra.mxu0 %v2997
    %3181 = vmatpush.bf16.msra.mxu0 %v2995
    %3182 = vmatmul.bf16.gmra.mxu0 %v2727
    %v3183 = vpop.f32.mrf.mxu0
    %v3184 = vadd.f32 %v2799, %v3183
    %v3185 = vpop.f32.mrf.mxu0
    %3186 = vdwg.mxu0
    %3187 = vmatpush.bf16.msra.mxu0 %v3025
    %3188 = vmatpush.bf16.msra.mxu0 %v3023
    %3189 = vmatpush.bf16.msra.mxu0 %v3021
    %3190 = vmatpush.bf16.msra.mxu0 %v3019
    %3191 = vmatpush.bf16.msra.mxu0 %v3017
    %3192 = vmatpush.bf16.msra.mxu0 %v3015
    %3193 = vmatpush.bf16.msra.mxu0 %v3013
    %3194 = vmatpush.bf16.msra.mxu0 %v3011
    %3195 = vmatmul.bf16.gmra.mxu0 %v2728
    %v3196 = vpop.f32.mrf.mxu0
    %v3197 = vadd.f32 %v3184, %v3196
    %v3198 = vpop.f32.mrf.mxu0
    %3199 = vdwg.mxu0
    %3200 = vmatpush.bf16.msra.mxu0 %v3041
    %3201 = vmatpush.bf16.msra.mxu0 %v3039
    %3202 = vmatpush.bf16.msra.mxu0 %v3037
    %3203 = vmatpush.bf16.msra.mxu0 %v3035
    %3204 = vmatpush.bf16.msra.mxu0 %v3033
    %3205 = vmatpush.bf16.msra.mxu0 %v3031
    %3206 = vmatpush.bf16.msra.mxu0 %v3029
    %3207 = vmatpush.bf16.msra.mxu0 %v3027
    %3208 = vmatmul.bf16.gmra.mxu0 %v2729
    %v3209 = vpop.f32.mrf.mxu0
    %v3210 = vadd.f32 %v3197, %v3209
    %v3211 = vpop.f32.mrf.mxu0
    %3212 = vdwg.mxu0
    %3213 = vmatpush.bf16.msra.mxu0 %v3057
    %3214 = vmatpush.bf16.msra.mxu0 %v3055
    %3215 = vmatpush.bf16.msra.mxu0 %v3053
    %3216 = vmatpush.bf16.msra.mxu0 %v3051
    %3217 = vmatpush.bf16.msra.mxu0 %v3049
    %3218 = vmatpush.bf16.msra.mxu0 %v3047
    %3219 = vmatpush.bf16.msra.mxu0 %v3045
    %3220 = vmatpush.bf16.msra.mxu0 %v3043
    %3221 = vmatmul.bf16.gmra.mxu0 %v2730
    %v3222 = vpop.f32.mrf.mxu0
    %v3223 = vadd.f32 %v3210, %v3222
    %v3224 = vpop.f32.mrf.mxu0
    %3225 = vdwg.mxu0
    %v3226 = vmax.f32 %v3171, 0.0
    %v3227 = vmax.f32 %v3223, 0.0
    %v3228 = vpack.c.bf16 %v3226, %v3226
    %v3229 = vpack.c.bf16 %v3227, %v3227
    %v3230 = vld [vmem:[#allocation2 + $0xf80] sm:$0xf]
    %v3231 = vld [vmem:[#allocation2 + $0xf90] sm:$0xf]
    %v3232 = vld [vmem:[#allocation2 + $0xfa0] sm:$0xf]
    %v3233 = vld [vmem:[#allocation2 + $0xfb0] sm:$0xf]
    %v3234 = vld [vmem:[#allocation2 + $0xfc0] sm:$0xf]
    %v3235 = vld [vmem:[#allocation2 + $0xfd0] sm:$0xf]
    %v3236 = vld [vmem:[#allocation2 + $0xfe0] sm:$0xf]
    %v3237 = vld [vmem:[#allocation2 + $0xff0] sm:$0xf]
    %v3238 = vld [vmem:[#allocation2 + $0x1000] sm:$0xf]
    %v3239 = vld [vmem:[#allocation2 + $0x1010] sm:$0xf]
    %v3240 = vld [vmem:[#allocation2 + $0x1020] sm:$0xf]
    %v3241 = vld [vmem:[#allocation2 + $0x1030] sm:$0xf]
    %v3242 = vld [vmem:[#allocation2 + $0x1040] sm:$0xf]
    %v3243 = vld [vmem:[#allocation2 + $0x1050] sm:$0xf]
    %v3244 = vld [vmem:[#allocation2 + $0x1060] sm:$0xf]
    %v3245 = vld [vmem:[#allocation2 + $0x1070] sm:$0xf]
    %v3246 = vld [vmem:[#allocation2 + $0x1080] sm:$0xf]
    %v3247 = vld [vmem:[#allocation2 + $0x1090] sm:$0xf]
    %v3248 = vld [vmem:[#allocation2 + $0x10a0] sm:$0xf]
    %v3249 = vld [vmem:[#allocation2 + $0x10b0] sm:$0xf]
    %v3250 = vld [vmem:[#allocation2 + $0x10c0] sm:$0xf]
    %v3251 = vld [vmem:[#allocation2 + $0x10d0] sm:$0xf]
    %v3252 = vld [vmem:[#allocation2 + $0x10e0] sm:$0xf]
    %v3253 = vld [vmem:[#allocation2 + $0x10f0] sm:$0xf]
    %v3254 = vld [vmem:[#allocation2 + $0x1100] sm:$0xf]
    %v3255 = vld [vmem:[#allocation2 + $0x1110] sm:$0xf]
    %v3256 = vld [vmem:[#allocation2 + $0x1120] sm:$0xf]
    %v3257 = vld [vmem:[#allocation2 + $0x1130] sm:$0xf]
    %v3258 = vld [vmem:[#allocation2 + $0x1140] sm:$0xf]
    %v3259 = vld [vmem:[#allocation2 + $0x1150] sm:$0xf]
    %v3260 = vld [vmem:[#allocation2 + $0x1160] sm:$0xf]
    %v3261 = vld [vmem:[#allocation2 + $0x1170] sm:$0xf]
    %v3262 = vld [vmem:[#allocation5 + $0x6] ss:$0 sm:$0xff]
    %v3295 = vunpack.c.l.b16 %v3230
    %v3296 = vunpack.c.l.b16 %v3231
    %v3297 = vunpack.c.l.b16 %v3232
    %v3298 = vunpack.c.l.b16 %v3233
    %v3299 = vunpack.c.l.b16 %v3234
    %v3300 = vunpack.c.l.b16 %v3235
    %v3301 = vunpack.c.l.b16 %v3236
    %v3302 = vunpack.c.l.b16 %v3237
    %v3303 = vunpack.c.l.b16 %v3238
    %v3304 = vunpack.c.l.b16 %v3239
    %v3305 = vunpack.c.l.b16 %v3240
    %v3306 = vunpack.c.l.b16 %v3241
    %v3307 = vunpack.c.l.b16 %v3242
    %v3308 = vunpack.c.l.b16 %v3243
    %v3309 = vunpack.c.l.b16 %v3244
    %v3310 = vunpack.c.l.b16 %v3245
    %v3311 = vunpack.c.l.b16 %v3246
    %v3312 = vunpack.c.l.b16 %v3247
    %v3313 = vunpack.c.l.b16 %v3248
    %v3314 = vunpack.c.l.b16 %v3249
    %v3315 = vunpack.c.l.b16 %v3250
    %v3316 = vunpack.c.l.b16 %v3251
    %v3317 = vunpack.c.l.b16 %v3252
    %v3318 = vunpack.c.l.b16 %v3253
    %v3319 = vunpack.c.l.b16 %v3254
    %v3320 = vunpack.c.l.b16 %v3255
    %v3321 = vunpack.c.l.b16 %v3256
    %v3322 = vunpack.c.l.b16 %v3257
    %v3323 = vunpack.c.l.b16 %v3258
    %v3324 = vunpack.c.l.b16 %v3259
    %v3325 = vunpack.c.l.b16 %v3260
    %v3326 = vunpack.c.l.b16 %v3261
    %v3327 = vpack.c.b16 %v3296, %v3295
    %v3328 = vpack.c.b16 %v3298, %v3297
    %v3329 = vpack.c.b16 %v3300, %v3299
    %v3330 = vpack.c.b16 %v3302, %v3301
    %v3331 = vpack.c.b16 %v3304, %v3303
    %v3332 = vpack.c.b16 %v3306, %v3305
    %v3333 = vpack.c.b16 %v3308, %v3307
    %v3334 = vpack.c.b16 %v3310, %v3309
    %v3335 = vpack.c.b16 %v3312, %v3311
    %v3336 = vpack.c.b16 %v3314, %v3313
    %v3337 = vpack.c.b16 %v3316, %v3315
    %v3338 = vpack.c.b16 %v3318, %v3317
    %v3339 = vpack.c.b16 %v3320, %v3319
    %v3340 = vpack.c.b16 %v3322, %v3321
    %v3341 = vpack.c.b16 %v3324, %v3323
    %v3342 = vpack.c.b16 %v3326, %v3325
    %3359 = vmatpush.bf16.msra.mxu0 %v3334
    %3360 = vmatpush.bf16.msra.mxu0 %v3333
    %3361 = vmatpush.bf16.msra.mxu0 %v3332
    %3362 = vmatpush.bf16.msra.mxu0 %v3331
    %3363 = vmatpush.bf16.msra.mxu0 %v3330
    %3364 = vmatpush.bf16.msra.mxu0 %v3329
    %3365 = vmatpush.bf16.msra.mxu0 %v3328
    %3366 = vmatpush.bf16.msra.mxu0 %v3327
    %3367 = vmatmul.bf16.gmra.mxu0 %v3228
    %v3368 = vpop.f32.mrf.mxu0
    %v3369 = vadd.f32 %v3262, %v3368
    %v3370 = vpop.f32.mrf.mxu0
    %3371 = vdwg.mxu0
    %3372 = vmatpush.bf16.msra.mxu0 %v3342
    %3373 = vmatpush.bf16.msra.mxu0 %v3341
    %3374 = vmatpush.bf16.msra.mxu0 %v3340
    %3375 = vmatpush.bf16.msra.mxu0 %v3339
    %3376 = vmatpush.bf16.msra.mxu0 %v3338
    %3377 = vmatpush.bf16.msra.mxu0 %v3337
    %3378 = vmatpush.bf16.msra.mxu0 %v3336
    %3379 = vmatpush.bf16.msra.mxu0 %v3335
    %3380 = vmatmul.bf16.gmra.mxu0 %v3229
    %v3381 = vpop.f32.mrf.mxu0
    %v3382 = vadd.f32 %v3369, %v3381
    %v3383 = vpop.f32.mrf.mxu0
    %3384 = vdwg.mxu0
    %v3385 = vmax.f32 %v3382, 0.0
    %v3386 = vpack.c.bf16 %v3385, %v3385
    %v3387 = vld [vmem:[#allocation2 + $0x1180] sm:$0xf]
    %v3388 = vld [vmem:[#allocation2 + $0x1190] sm:$0xf]
    %v3389 = vld [vmem:[#allocation2 + $0x11a0] sm:$0xf]
    %v3390 = vld [vmem:[#allocation2 + $0x11b0] sm:$0xf]
    %v3391 = vld [vmem:[#allocation2 + $0x11c0] sm:$0xf]
    %v3392 = vld [vmem:[#allocation2 + $0x11d0] sm:$0xf]
    %v3393 = vld [vmem:[#allocation2 + $0x11e0] sm:$0xf]
    %v3394 = vld [vmem:[#allocation2 + $0x11f0] sm:$0xf]
    %v3395 = vld [vmem:[#allocation2 + $0x1200] sm:$0xf]
    %v3396 = vld [vmem:[#allocation2 + $0x1210] sm:$0xf]
    %v3397 = vld [vmem:[#allocation2 + $0x1220] sm:$0xf]
    %v3398 = vld [vmem:[#allocation2 + $0x1230] sm:$0xf]
    %v3399 = vld [vmem:[#allocation2 + $0x1240] sm:$0xf]
    %v3400 = vld [vmem:[#allocation2 + $0x1250] sm:$0xf]
    %v3401 = vld [vmem:[#allocation2 + $0x1260] sm:$0xf]
    %v3402 = vld [vmem:[#allocation2 + $0x1270] sm:$0xf]
    %v3403 = vld [vmem:[#allocation5 + $0x7] ss:$0 sm:$0xff]
    %v3420 = vunpack.c.l.b16 %v3387
    %v3421 = vunpack.c.l.b16 %v3388
    %v3422 = vunpack.c.l.b16 %v3389
    %v3423 = vunpack.c.l.b16 %v3390
    %v3424 = vunpack.c.l.b16 %v3391
    %v3425 = vunpack.c.l.b16 %v3392
    %v3426 = vunpack.c.l.b16 %v3393
    %v3427 = vunpack.c.l.b16 %v3394
    %v3428 = vunpack.c.l.b16 %v3395
    %v3429 = vunpack.c.l.b16 %v3396
    %v3430 = vunpack.c.l.b16 %v3397
    %v3431 = vunpack.c.l.b16 %v3398
    %v3432 = vunpack.c.l.b16 %v3399
    %v3433 = vunpack.c.l.b16 %v3400
    %v3434 = vunpack.c.l.b16 %v3401
    %v3435 = vunpack.c.l.b16 %v3402
    %v3436 = vpack.c.b16 %v3421, %v3420
    %v3437 = vpack.c.b16 %v3423, %v3422
    %v3438 = vpack.c.b16 %v3425, %v3424
    %v3439 = vpack.c.b16 %v3427, %v3426
    %v3440 = vpack.c.b16 %v3429, %v3428
    %v3441 = vpack.c.b16 %v3431, %v3430
    %v3442 = vpack.c.b16 %v3433, %v3432
    %v3443 = vpack.c.b16 %v3435, %v3434
    %3452 = vmatpush.bf16.msra.mxu0 %v3443
    %3453 = vmatpush.bf16.msra.mxu0 %v3442
    %3454 = vmatpush.bf16.msra.mxu0 %v3441
    %3455 = vmatpush.bf16.msra.mxu0 %v3440
    %3456 = vmatpush.bf16.msra.mxu0 %v3439
    %3457 = vmatpush.bf16.msra.mxu0 %v3438
    %3458 = vmatpush.bf16.msra.mxu0 %v3437
    %3459 = vmatpush.bf16.msra.mxu0 %v3436
    %3460 = vmatmul.bf16.gmra.mxu0 %v3386
    %v3461 = vpop.f32.mrf.mxu0
    %v3462 = vadd.f32 %v3403, %v3461
    %v3463 = vpop.f32.mrf.mxu0
    %3464 = vdwg.mxu0
    %v3465 = vmax.f32 %v3462, 0.0
    %v3466 = vpack.c.bf16 %v3465, %v3465
    %v3467 = vld [vmem:[#allocation2 + $0x1280] sm:$0xf]
    %v3468 = vld [vmem:[#allocation2 + $0x1290] sm:$0xf]
    %v3469 = vld [vmem:[#allocation2 + $0x12a0] sm:$0xf]
    %v3470 = vld [vmem:[#allocation2 + $0x12b0] sm:$0xf]
    %v3471 = vld [vmem:[#allocation2 + $0x12c0] sm:$0xf]
    %v3472 = vld [vmem:[#allocation2 + $0x12d0] sm:$0xf]
    %v3473 = vld [vmem:[#allocation2 + $0x12e0] sm:$0xf]
    %v3474 = vld [vmem:[#allocation2 + $0x12f0] sm:$0xf]
    %v3475 = vld [vmem:[#allocation2 + $0x1300] sm:$0xf]
    %v3476 = vld [vmem:[#allocation2 + $0x1310] sm:$0xf]
    %v3477 = vld [vmem:[#allocation2 + $0x1320] sm:$0xf]
    %v3478 = vld [vmem:[#allocation2 + $0x1330] sm:$0xf]
    %v3479 = vld [vmem:[#allocation2 + $0x1340] sm:$0xf]
    %v3480 = vld [vmem:[#allocation2 + $0x1350] sm:$0xf]
    %v3481 = vld [vmem:[#allocation2 + $0x1360] sm:$0xf]
    %v3482 = vld [vmem:[#allocation2 + $0x1370] sm:$0xf]
    %v3483 = vld [vmem:[#allocation5 + $0x20] ss:$0 sm:$0xff]
    %v3500 = vunpack.c.l.b16 %v3467
    %v3501 = vunpack.c.l.b16 %v3468
    %v3502 = vunpack.c.l.b16 %v3469
    %v3503 = vunpack.c.l.b16 %v3470
    %v3504 = vunpack.c.l.b16 %v3471
    %v3505 = vunpack.c.l.b16 %v3472
    %v3506 = vunpack.c.l.b16 %v3473
    %v3507 = vunpack.c.l.b16 %v3474
    %v3508 = vunpack.c.l.b16 %v3475
    %v3509 = vunpack.c.l.b16 %v3476
    %v3510 = vunpack.c.l.b16 %v3477
    %v3511 = vunpack.c.l.b16 %v3478
    %v3512 = vunpack.c.l.b16 %v3479
    %v3513 = vunpack.c.l.b16 %v3480
    %v3514 = vunpack.c.l.b16 %v3481
    %v3515 = vunpack.c.l.b16 %v3482
    %v3516 = vpack.c.b16 %v3501, %v3500
    %v3517 = vpack.c.b16 %v3503, %v3502
    %v3518 = vpack.c.b16 %v3505, %v3504
    %v3519 = vpack.c.b16 %v3507, %v3506
    %v3520 = vpack.c.b16 %v3509, %v3508
    %v3521 = vpack.c.b16 %v3511, %v3510
    %v3522 = vpack.c.b16 %v3513, %v3512
    %v3523 = vpack.c.b16 %v3515, %v3514
    %3532 = vmatpush.bf16.msra.mxu0 %v3523
    %3533 = vmatpush.bf16.msra.mxu0 %v3522
    %3534 = vmatpush.bf16.msra.mxu0 %v3521
    %3535 = vmatpush.bf16.msra.mxu0 %v3520
    %3536 = vmatpush.bf16.msra.mxu0 %v3519
    %3537 = vmatpush.bf16.msra.mxu0 %v3518
    %3538 = vmatpush.bf16.msra.mxu0 %v3517
    %3539 = vmatpush.bf16.msra.mxu0 %v3516
    %3540 = vmatmul.bf16.gmra.mxu0 %v3466
    %v3541 = vpop.f32.mrf.mxu0
    %v3542 = vadd.f32 %v3483, %v3541
    %v3543 = vpop.f32.mrf.mxu0
    %3544 = vdwg.mxu0
    %3545 = vmax.xlane.f32.xlu0 %v3542
    %v3546 = vpop.xlane.xlu0 %3545
    %v3547 = vsub.f32 %v3542, %v3546
    %v3548 = vmul.f32 %v3547, 1.442695
    %v3549 = vpow.pop %v3548
    %3550 = vadd.xlane.f32.xlu0 %v3549
    %v3551 = vpop.xlane.xlu0 %3550
    %v3552 = vlog2.pop %v3551
    %v3553 = vmul.f32 %v3552, 0.6931472
    %v3554 = vsub.f32 %v3547, %v3553
    %3555 = vst [vmem:[#allocation7] sm:$0xff] %v3554
    // Predicated region
    $region22: #{net_forward.1} parent=1 // pred_check
      _
    $region23: #{net_forward.1} parent=1 // pred_check_branch
      %3557 = sbr.rel (0) target = $region25
    $region24: #{net_forward.1} parent=1 // pred_region
      %3559 = vsyncadd [#allocation4], 0
      %s3561 = sshll.u32 [#allocation7], 4
      %s3562 = int_to_ptr.vmem [resolvable:$true] %s3561
      %s3563 = sshll.u32 %s3, 4
      %s3564 = int_to_ptr.hbm [resolvable:$true] %s3563
      %3566 = dma.vmem_to_hbm [thread:$0]  %s3562, 128, %s3564, [#allocation4]
    $region25: #{net_forward.1} parent=1 // pred_fallthru
      _
    // Predicated region
    $region26: #{net_forward.1} parent=1 // pred_check
      _
    $region27: #{net_forward.1} parent=1 // pred_check_branch
      %3568 = sbr.rel (0) target = $region29
    $region28: #{net_forward.1} parent=1 // pred_region
      %3570 = dma.done [#allocation4], 128
    $region29: #{net_forward.1} parent=1 // pred_fallthru
      _
    %3571 = vsyncpa [#allocation3], 1
    %3572 = vsyncpa [#allocation6], 1
    %3573 = vsyncpa [#allocation4], 1

</llo_original>
